<compile_context>
chip_gen: v7x
topology: tpu7x:2x2x1
jax: 0.10.0
libtpu: 0.0.40
codegen_flags: <defaults>
</compile_context>

<pallas_src>
import jax
import jax.numpy as jnp
from jax import lax
from jax.experimental import pallas as pl
from jax.experimental.pallas import tpu as pltpu


def _im2col_3x3(xp, ho, wo):
    """xp: (ho+2, wo+2, C) zero-padded -> (ho, wo, 9*C) tap matrix.

    Tap order along the last axis is (ky, kx, c), matching an HWIO conv weight
    reshaped to (9*C, Cout).
    """
    taps = [xp[dy:dy + ho, dx:dx + wo, :] for dy in range(3) for dx in range(3)]
    return jnp.concatenate(taps, axis=-1)


def _pad_w(x):
    """Zero-pad the width (second-to-last) axis of (rows, W, C) by 1 per side."""
    rows, _, c = x.shape
    z = jnp.zeros((rows, 1, c), x.dtype)
    return jnp.concatenate([z, x, z], axis=1)


def _conv3x3(xp_f32, w_ref, ho, wo):
    """One MXU matmul per 3x3 conv: (ho*wo, 9C) @ (9C, Cout), f32 accumulation."""
    p = _im2col_3x3(xp_f32, ho, wo).astype(jnp.bfloat16)
    return jnp.einsum("hwk,kd->hwd", p, w_ref[...],
                      preferred_element_type=jnp.float32)


def _basic_block_kernel(xs_ref, xt_ref, xb_ref, w1_ref, b1_ref, w2_ref, b2_ref,
                        o_ref):
    """One (batch, H-strip) tile per grid step.

    xs_ref : (1, SH, W, C)  strip rows of the unpadded input (NHWC), f32
    xt_ref : (1, 2,  W, C)  two rows above the strip (block index clamped at top)
    xb_ref : (1, 2,  W, C)  two rows below the strip (block index clamped at bottom)
    w1_ref : (9*C, C)       BN-folded conv1 weight, im2col rows = (ky,kx,cin), bf16
    b1_ref : (1, C)         BN-folded conv1 bias, f32
    w2_ref : (9*C, C)       BN-folded conv2 weight, bf16
    b2_ref : (1, C)         BN-folded conv2 bias, f32
    o_ref  : (1, SH, W, C)  output strip
    """
    _, SH, W, C = o_ref.shape
    s = pl.program_id(1)
    ns = pl.num_programs(1)
    # Scalar 0/1 factors for border zeroing (multiplicative masking lowers to a
    # plain scalar-broadcast multiply; avoids vector-bool selects).
    not_first = (s > 0).astype(jnp.float32)
    not_last = (s < ns - 1).astype(jnp.float32)

    x_strip = xs_ref[0]                                    # (SH, W, C) f32
    top = xt_ref[0] * not_first                            # x rows strip_start-2,-1
    bot = xb_ref[0] * not_last                             # x rows strip_end, +1

    # ---- conv1 + bn1 (folded) + relu over SH+2 rows (1-row mid halo for conv2)
    x_ext = jnp.concatenate([top, x_strip, bot], axis=0)   # (SH+4, W, C) f32
    xp = _pad_w(x_ext)                                     # (SH+4, W+2, C)
    y1 = _conv3x3(xp, w1_ref, SH + 2, W) + b1_ref[0]       # (SH+2, W, C) f32
    y1 = jnp.maximum(y1, 0.0)

    # conv2's vertical padding is literal zeros: zero the mid rows that fall
    # outside the image (only at the first / last strip of each image).
    y1_top = y1[0:1] * not_first
    y1_bot = y1[SH + 1:SH + 2] * not_last
    y1 = jnp.concatenate([y1_top, y1[1:SH + 1], y1_bot], axis=0)

    # ---- conv2 + bn2 (folded): operand stays a value (no VMEM round-trip)
    y1p = _pad_w(y1)                                       # (SH+2, W+2, C) f32
    y2 = _conv3x3(y1p, w2_ref, SH, W) + b2_ref[0]          # (SH, W, C) f32

    # ---- residual add (downsample=None -> identity = x) + relu, f32 epilogue
    o_ref[0] = jnp.maximum(y2 + x_strip, 0.0).astype(o_ref.dtype)


def _pick_strip_h(H):
    """Prefer >=4 strips/image (more grid steps per core to pipeline), even strip."""
    for sh in (8, 4, 2):
        if H % sh == 0 and H // sh >= 4:
            return sh
    for sh in (8, 4, 2):
        if H % sh == 0:
            return sh
    raise ValueError(f"H={H} must be even for the 2-row halo BlockSpecs")


@jax.jit
def basic_block_forward(x_nchw, w1_hwio, b1, w2_hwio, b2):
    """x_nchw: (N, Cin, H, W) f32; weights HWIO (BN-folded); returns NCHW f32."""
    x = jnp.transpose(x_nchw, (0, 2, 3, 1))                # (N, H, W, Cin)
    N, H, W, Cin = x.shape
    Cout = w1_hwio.shape[3]
    assert Cin == Cout, "identity residual (downsample=None) needs inplanes == planes"

    SH = _pick_strip_h(H)                                  # even, divides H
    n_strips = H // SH
    half = SH // 2                                         # halo block height = 2 rows

    # im2col weight layout: rows = (ky, kx, cin) flattened, cols = cout. bf16
    # halves the (broadcast) weight DMA and feeds the MXU natively.
    w1m = w1_hwio.reshape(9 * Cin, Cout).astype(jnp.bfloat16)
    w2m = w2_hwio.reshape(9 * Cout, Cout).astype(jnp.bfloat16)
    b1r = b1.reshape(1, Cout).astype(jnp.float32)
    b2r = b2.reshape(1, Cout).astype(jnp.float32)

    # Two-row halo blocks of the UNPADDED x, block indices clamped at the image
    # border (the fetched rows are zeroed in-kernel at first/last strips).
    top_map = lambda n, s: (n, jnp.maximum(s * half - 1, 0), 0, 0)
    bot_map = lambda n, s: (n, jnp.minimum((s + 1) * half, H // 2 - 1), 0, 0)

    out_nhwc = pl.pallas_call(
        _basic_block_kernel,
        out_shape=jax.ShapeDtypeStruct((N, H, W, Cout), x.dtype),
        grid_spec=pltpu.PrefetchScalarGridSpec(
            num_scalar_prefetch=0,
            grid=(N, n_strips),
            in_specs=[
                pl.BlockSpec((1, SH, W, Cin), lambda n, s: (n, s, 0, 0)),
                pl.BlockSpec((1, 2, W, Cin), top_map),
                pl.BlockSpec((1, 2, W, Cin), bot_map),
                pl.BlockSpec((9 * Cin, Cout), lambda n, s: (0, 0)),
                pl.BlockSpec((1, Cout), lambda n, s: (0, 0)),
                pl.BlockSpec((9 * Cout, Cout), lambda n, s: (0, 0)),
                pl.BlockSpec((1, Cout), lambda n, s: (0, 0)),
            ],
            out_specs=pl.BlockSpec((1, SH, W, Cout), lambda n, s: (n, s, 0, 0)),
        ),
        compiler_params=pltpu.CompilerParams(
            dimension_semantics=("parallel", "parallel"),
            # Tiny here; for real feature maps re-derive strip_h for v7x's
            # 32 MiB default-scoped / 64 MiB physical VMEM and raise this.
            vmem_limit_bytes=32 * 1024 * 1024),
    )(x, x, x, w1m, b1r, w2m, b2r)

    return jnp.transpose(out_nhwc, (0, 3, 1, 2))


def _fuse_conv_bn(w_oihw, gamma, beta, mean, var, eps=1e-5):
    """Fold BatchNorm (eval) into a bias-free conv, like fuse_conv_bn_eval."""
    scale = gamma / jnp.sqrt(var + eps)                    # (Cout,)
    w_fused = w_oihw * scale[:, None, None, None]          # (Cout, Cin, 3, 3)
    b_fused = beta - mean * scale                          # (Cout,)
    w_hwio = jnp.transpose(w_fused, (2, 3, 1, 0))          # OIHW -> HWIO
    return w_hwio, b_fused


def _reference_forward(x_nchw, w1_hwio, b1, w2_hwio, b2):
    """Pure-JAX reference with the same numerics as the kernel:
    bf16 conv operands, f32 accumulation, f32 bias/ReLU/residual epilogue."""
    x = jnp.transpose(x_nchw, (0, 2, 3, 1))
    dn = ("NHWC", "HWIO", "NHWC")
    y = lax.conv_general_dilated(
        x.astype(jnp.bfloat16), w1_hwio.astype(jnp.bfloat16), (1, 1),
        ((1, 1), (1, 1)), dimension_numbers=dn,
        preferred_element_type=jnp.float32) + b1
    y = jnp.maximum(y, 0.0)
    y = lax.conv_general_dilated(
        y.astype(jnp.bfloat16), w2_hwio.astype(jnp.bfloat16), (1, 1),
        ((1, 1), (1, 1)), dimension_numbers=dn,
        preferred_element_type=jnp.float32) + b2
    y = jnp.maximum(y + x, 0.0)
    return jnp.transpose(y, (0, 3, 1, 2))


if __name__ == "__main__":
    # Small, deterministic config: inplanes = planes = 4, stride = 1, no downsample.
    N, C, H, W = 2, 4, 16, 16
    key = jax.random.PRNGKey(0)
    ks = jax.random.split(key, 11)

    x = jax.random.normal(ks[0], (N, C, H, W), jnp.float32)

    # conv1 / conv2 raw weights (torch OIHW layout, bias=False).
    w1_raw = jax.random.normal(ks[1], (C, C, 3, 3), jnp.float32) * 0.2
    w2_raw = jax.random.normal(ks[2], (C, C, 3, 3), jnp.float32) * 0.2
    # BatchNorm parameters / running stats (eval mode).
    g1 = jax.random.uniform(ks[3], (C,), jnp.float32, 0.5, 1.5)
    be1 = jax.random.normal(ks[4], (C,), jnp.float32) * 0.1
    m1 = jax.random.normal(ks[5], (C,), jnp.float32) * 0.1
    v1 = jax.random.uniform(ks[6], (C,), jnp.float32, 0.5, 1.5)
    g2 = jax.random.uniform(ks[7], (C,), jnp.float32, 0.5, 1.5)
    be2 = jax.random.normal(ks[8], (C,), jnp.float32) * 0.1
    m2 = jax.random.normal(ks[9], (C,), jnp.float32) * 0.1
    v2 = jax.random.uniform(ks[10], (C,), jnp.float32, 0.5, 1.5)

    w1, b1 = _fuse_conv_bn(w1_raw, g1, be1, m1, v1)
    w2, b2 = _fuse_conv_bn(w2_raw, g2, be2, m2, v2)

    out = basic_block_forward(x, w1, b1, w2, b2)
    out = jax.block_until_ready(out)

    ref = _reference_forward(x, w1, b1, w2, b2)
    assert out.shape == (N, C, H, W), out.shape
    max_err = float(jnp.max(jnp.abs(out - ref)))
    assert jnp.allclose(out, ref, atol=2e-3, rtol=2e-3), max_err

    print("KERNEL_OK")
</pallas_src>

<mosaic_0001>
module attributes {stable_mosaic.version = 11 : i64} {
  func.func @_basic_block_kernel(%arg0: i32, %arg1: i32, %arg2: memref<1x4x16x4xf32, #tpu.memory_space<vmem>>, %arg3: memref<1x2x16x4xf32, #tpu.memory_space<vmem>>, %arg4: memref<1x2x16x4xf32, #tpu.memory_space<vmem>>, %arg5: memref<36x4xbf16, #tpu.memory_space<vmem>>, %arg6: memref<1x4xf32, #tpu.memory_space<vmem>>, %arg7: memref<36x4xbf16, #tpu.memory_space<vmem>>, %arg8: memref<1x4xf32, #tpu.memory_space<vmem>>, %arg9: memref<1x4x16x4xf32, #tpu.memory_space<vmem>>) attributes {dimension_semantics = [#tpu.dimension_semantics<parallel>, #tpu.dimension_semantics<parallel>], iteration_bounds = array<i64: 2, 4>, scalar_prefetch = 0 : i64, scratch_operands = 0 : i64, tpu.core_type = #tpu.core_type<tc>, window_params = [{transform_indices = @transform_0, window_bounds = array<i64: 1, 4, 16, 4>}, {transform_indices = @transform_1, window_bounds = array<i64: 1, 2, 16, 4>}, {transform_indices = @transform_2, window_bounds = array<i64: 1, 2, 16, 4>}, {pipeline_mode = #tpu.pipeline_mode<synchronous>, transform_indices = @transform_3, window_bounds = array<i64: 36, 4>}, {pipeline_mode = #tpu.pipeline_mode<synchronous>, transform_indices = @transform_4, window_bounds = array<i64: 1, 4>}, {pipeline_mode = #tpu.pipeline_mode<synchronous>, transform_indices = @transform_5, window_bounds = array<i64: 36, 4>}, {pipeline_mode = #tpu.pipeline_mode<synchronous>, transform_indices = @transform_6, window_bounds = array<i64: 1, 4>}, {transform_indices = @transform_7, window_bounds = array<i64: 1, 4, 16, 4>}]} {
    %c0_i32 = arith.constant 0 : i32
    %0 = arith.cmpi sgt, %arg1, %c0_i32 : i32
    %1 = arith.extui %0 : i1 to i32
    %2 = arith.sitofp %1 : i32 to f32
    %c3_i32 = arith.constant 3 : i32
    %3 = arith.cmpi slt, %arg1, %c3_i32 : i32
    %4 = arith.extui %3 : i1 to i32
    %5 = arith.sitofp %4 : i32 to f32
    %c0 = arith.constant 0 : index
    %c0_0 = arith.constant 0 : index
    %c0_1 = arith.constant 0 : index
    %c0_2 = arith.constant 0 : index
    %6 = vector.load %arg2[%c0, %c0_0, %c0_1, %c0_2] : memref<1x4x16x4xf32, #tpu.memory_space<vmem>>, vector<1x4x16x4xf32>
    %7 = vector.shape_cast %6 : vector<1x4x16x4xf32> to vector<4x16x4xf32>
    %c0_3 = arith.constant 0 : index
    %c0_4 = arith.constant 0 : index
    %c0_5 = arith.constant 0 : index
    %c0_6 = arith.constant 0 : index
    %8 = vector.load %arg3[%c0_3, %c0_4, %c0_5, %c0_6] : memref<1x2x16x4xf32, #tpu.memory_space<vmem>>, vector<1x2x16x4xf32>
    %9 = vector.shape_cast %8 : vector<1x2x16x4xf32> to vector<2x16x4xf32>
    %10 = vector.broadcast %2 : f32 to vector<2x16x4xf32>
    %11 = arith.mulf %9, %10 : vector<2x16x4xf32>
    %c0_7 = arith.constant 0 : index
    %c0_8 = arith.constant 0 : index
    %c0_9 = arith.constant 0 : index
    %c0_10 = arith.constant 0 : index
    %12 = vector.load %arg4[%c0_7, %c0_8, %c0_9, %c0_10] : memref<1x2x16x4xf32, #tpu.memory_space<vmem>>, vector<1x2x16x4xf32>
    %13 = vector.shape_cast %12 : vector<1x2x16x4xf32> to vector<2x16x4xf32>
    %14 = vector.broadcast %5 : f32 to vector<2x16x4xf32>
    %15 = arith.mulf %13, %14 : vector<2x16x4xf32>
    %16 = tpu.concatenate %11, %7, %15 in 0 : vector<2x16x4xf32>, vector<4x16x4xf32>, vector<2x16x4xf32> -> vector<8x16x4xf32>
    %cst = arith.constant 0.000000e+00 : f32
    %17 = vector.broadcast %cst : f32 to vector<8x1x4xf32>
    %18 = tpu.concatenate %17, %16, %17 in 1 : vector<8x1x4xf32>, vector<8x16x4xf32>, vector<8x1x4xf32> -> vector<8x18x4xf32>
    %19 = vector.extract_strided_slice %18 {offsets = [0, 0, 0], sizes = [6, 16, 4], strides = [1, 1, 1]} : vector<8x18x4xf32> to vector<6x16x4xf32>
    %20 = vector.extract_strided_slice %18 {offsets = [0, 1, 0], sizes = [6, 16, 4], strides = [1, 1, 1]} : vector<8x18x4xf32> to vector<6x16x4xf32>
    %21 = vector.extract_strided_slice %18 {offsets = [0, 2, 0], sizes = [6, 16, 4], strides = [1, 1, 1]} : vector<8x18x4xf32> to vector<6x16x4xf32>
    %22 = vector.extract_strided_slice %18 {offsets = [1, 0, 0], sizes = [6, 16, 4], strides = [1, 1, 1]} : vector<8x18x4xf32> to vector<6x16x4xf32>
    %23 = vector.extract_strided_slice %18 {offsets = [1, 1, 0], sizes = [6, 16, 4], strides = [1, 1, 1]} : vector<8x18x4xf32> to vector<6x16x4xf32>
    %24 = vector.extract_strided_slice %18 {offsets = [1, 2, 0], sizes = [6, 16, 4], strides = [1, 1, 1]} : vector<8x18x4xf32> to vector<6x16x4xf32>
    %25 = vector.extract_strided_slice %18 {offsets = [2, 0, 0], sizes = [6, 16, 4], strides = [1, 1, 1]} : vector<8x18x4xf32> to vector<6x16x4xf32>
    %26 = vector.extract_strided_slice %18 {offsets = [2, 1, 0], sizes = [6, 16, 4], strides = [1, 1, 1]} : vector<8x18x4xf32> to vector<6x16x4xf32>
    %27 = vector.extract_strided_slice %18 {offsets = [2, 2, 0], sizes = [6, 16, 4], strides = [1, 1, 1]} : vector<8x18x4xf32> to vector<6x16x4xf32>
    %28 = tpu.concatenate %19, %20, %21, %22, %23, %24, %25, %26, %27 in 2 : vector<6x16x4xf32>, vector<6x16x4xf32>, vector<6x16x4xf32>, vector<6x16x4xf32>, vector<6x16x4xf32>, vector<6x16x4xf32>, vector<6x16x4xf32>, vector<6x16x4xf32>, vector<6x16x4xf32> -> vector<6x16x36xf32>
    %29 = arith.truncf %28 : vector<6x16x36xf32> to vector<6x16x36xbf16>
    %c0_11 = arith.constant 0 : index
    %c0_12 = arith.constant 0 : index
    %30 = vector.load %arg5[%c0_11, %c0_12] : memref<36x4xbf16, #tpu.memory_space<vmem>>, vector<36x4xbf16>
    "tpu.trace_start"() <{level = 10 : i32, message = "hwk,kd->hwd"}> : () -> ()
    %cst_13 = arith.constant dense<0.000000e+00> : vector<6x16x4xf32>
    %31 = tpu.matmul %29, %30, %cst_13 {dimension_numbers = #tpu.dot_dimension_numbers<[2], [0], [0, 1], [1], [0, 0, 0, 1, 1, 1], [], []>} : vector<6x16x36xbf16>, vector<36x4xbf16>, vector<6x16x4xf32> -> vector<6x16x4xf32>
    "tpu.trace_stop"() : () -> ()
    %c0_14 = arith.constant 0 : index
    %c0_15 = arith.constant 0 : index
    %32 = vector.load %arg6[%c0_14, %c0_15] : memref<1x4xf32, #tpu.memory_space<vmem>>, vector<1x4xf32>
    %33 = vector.shape_cast %32 : vector<1x4xf32> to vector<4xf32>
    %34 = vector.shape_cast %33 : vector<4xf32> to vector<1x1x4xf32>
    %35 = vector.broadcast %34 : vector<1x1x4xf32> to vector<6x16x4xf32>
    %36 = arith.addf %31, %35 : vector<6x16x4xf32>
    %cst_16 = arith.constant 0.000000e+00 : f32
    %37 = vector.broadcast %cst_16 : f32 to vector<6x16x4xf32>
    %38 = arith.maximumf %36, %37 : vector<6x16x4xf32>
    %39 = vector.extract_strided_slice %38 {offsets = [0, 0, 0], sizes = [1, 16, 4], strides = [1, 1, 1]} : vector<6x16x4xf32> to vector<1x16x4xf32>
    %40 = vector.broadcast %2 : f32 to vector<1x16x4xf32>
    %41 = arith.mulf %39, %40 : vector<1x16x4xf32>
    %42 = vector.extract_strided_slice %38 {offsets = [5, 0, 0], sizes = [1, 16, 4], strides = [1, 1, 1]} : vector<6x16x4xf32> to vector<1x16x4xf32>
    %43 = vector.broadcast %5 : f32 to vector<1x16x4xf32>
    %44 = arith.mulf %42, %43 : vector<1x16x4xf32>
    %45 = vector.extract_strided_slice %38 {offsets = [1, 0, 0], sizes = [4, 16, 4], strides = [1, 1, 1]} : vector<6x16x4xf32> to vector<4x16x4xf32>
    %46 = tpu.concatenate %41, %45, %44 in 0 : vector<1x16x4xf32>, vector<4x16x4xf32>, vector<1x16x4xf32> -> vector<6x16x4xf32>
    %cst_17 = arith.constant 0.000000e+00 : f32
    %47 = vector.broadcast %cst_17 : f32 to vector<6x1x4xf32>
    %48 = tpu.concatenate %47, %46, %47 in 1 : vector<6x1x4xf32>, vector<6x16x4xf32>, vector<6x1x4xf32> -> vector<6x18x4xf32>
    %49 = vector.extract_strided_slice %48 {offsets = [0, 0, 0], sizes = [4, 16, 4], strides = [1, 1, 1]} : vector<6x18x4xf32> to vector<4x16x4xf32>
    %50 = vector.extract_strided_slice %48 {offsets = [0, 1, 0], sizes = [4, 16, 4], strides = [1, 1, 1]} : vector<6x18x4xf32> to vector<4x16x4xf32>
    %51 = vector.extract_strided_slice %48 {offsets = [0, 2, 0], sizes = [4, 16, 4], strides = [1, 1, 1]} : vector<6x18x4xf32> to vector<4x16x4xf32>
    %52 = vector.extract_strided_slice %48 {offsets = [1, 0, 0], sizes = [4, 16, 4], strides = [1, 1, 1]} : vector<6x18x4xf32> to vector<4x16x4xf32>
    %53 = vector.extract_strided_slice %48 {offsets = [1, 1, 0], sizes = [4, 16, 4], strides = [1, 1, 1]} : vector<6x18x4xf32> to vector<4x16x4xf32>
    %54 = vector.extract_strided_slice %48 {offsets = [1, 2, 0], sizes = [4, 16, 4], strides = [1, 1, 1]} : vector<6x18x4xf32> to vector<4x16x4xf32>
    %55 = vector.extract_strided_slice %48 {offsets = [2, 0, 0], sizes = [4, 16, 4], strides = [1, 1, 1]} : vector<6x18x4xf32> to vector<4x16x4xf32>
    %56 = vector.extract_strided_slice %48 {offsets = [2, 1, 0], sizes = [4, 16, 4], strides = [1, 1, 1]} : vector<6x18x4xf32> to vector<4x16x4xf32>
    %57 = vector.extract_strided_slice %48 {offsets = [2, 2, 0], sizes = [4, 16, 4], strides = [1, 1, 1]} : vector<6x18x4xf32> to vector<4x16x4xf32>
    %58 = tpu.concatenate %49, %50, %51, %52, %53, %54, %55, %56, %57 in 2 : vector<4x16x4xf32>, vector<4x16x4xf32>, vector<4x16x4xf32>, vector<4x16x4xf32>, vector<4x16x4xf32>, vector<4x16x4xf32>, vector<4x16x4xf32>, vector<4x16x4xf32>, vector<4x16x4xf32> -> vector<4x16x36xf32>
    %59 = arith.truncf %58 : vector<4x16x36xf32> to vector<4x16x36xbf16>
    %c0_18 = arith.constant 0 : index
    %c0_19 = arith.constant 0 : index
    %60 = vector.load %arg7[%c0_18, %c0_19] : memref<36x4xbf16, #tpu.memory_space<vmem>>, vector<36x4xbf16>
    "tpu.trace_start"() <{level = 10 : i32, message = "hwk,kd->hwd"}> : () -> ()
    %cst_20 = arith.constant dense<0.000000e+00> : vector<4x16x4xf32>
    %61 = tpu.matmul %59, %60, %cst_20 {dimension_numbers = #tpu.dot_dimension_numbers<[2], [0], [0, 1], [1], [0, 0, 0, 1, 1, 1], [], []>} : vector<4x16x36xbf16>, vector<36x4xbf16>, vector<4x16x4xf32> -> vector<4x16x4xf32>
    "tpu.trace_stop"() : () -> ()
    %c0_21 = arith.constant 0 : index
    %c0_22 = arith.constant 0 : index
    %62 = vector.load %arg8[%c0_21, %c0_22] : memref<1x4xf32, #tpu.memory_space<vmem>>, vector<1x4xf32>
    %63 = vector.shape_cast %62 : vector<1x4xf32> to vector<4xf32>
    %64 = vector.shape_cast %63 : vector<4xf32> to vector<1x1x4xf32>
    %65 = vector.broadcast %64 : vector<1x1x4xf32> to vector<4x16x4xf32>
    %66 = arith.addf %61, %65 : vector<4x16x4xf32>
    %67 = arith.addf %66, %7 : vector<4x16x4xf32>
    %cst_23 = arith.constant 0.000000e+00 : f32
    %68 = vector.broadcast %cst_23 : f32 to vector<4x16x4xf32>
    %69 = arith.maximumf %67, %68 : vector<4x16x4xf32>
    %c0_24 = arith.constant 0 : index
    %c0_25 = arith.constant 0 : index
    %c0_26 = arith.constant 0 : index
    %c0_27 = arith.constant 0 : index
    %70 = vector.load %arg9[%c0_24, %c0_25, %c0_26, %c0_27] : memref<1x4x16x4xf32, #tpu.memory_space<vmem>>, vector<1x4x16x4xf32>
    %71 = vector.shape_cast %70 : vector<1x4x16x4xf32> to vector<4x16x4xf32>
    %72 = vector.shape_cast %69 : vector<4x16x4xf32> to vector<1x4x16x4xf32>
    tpu.vector_store %arg9[%c0_24, %c0_25, %c0_26, %c0_27], %72 {strides = array<i32>} : memref<1x4x16x4xf32, #tpu.memory_space<vmem>>, vector<1x4x16x4xf32>,
    return
  }
  func.func @transform_0(%arg0: i32, %arg1: i32) -> (i32, i32, i32, i32) {
    %c0_i32 = arith.constant 0 : i32
    %c0_i32_0 = arith.constant 0 : i32
    %c0_i32_1 = arith.constant 0 : i32
    return %arg0, %arg1, %c0_i32, %c0_i32_0 : i32, i32, i32, i32
  }
  func.func @transform_1(%arg0: i32, %arg1: i32) -> (i32, i32, i32, i32) {
    %c2_i32 = arith.constant 2 : i32
    %0 = arith.muli %arg1, %c2_i32 : i32
    %c1_i32 = arith.constant 1 : i32
    %1 = arith.subi %0, %c1_i32 : i32
    %c0_i32 = arith.constant 0 : i32
    %2 = arith.maxsi %1, %c0_i32 : i32
    %c0_i32_0 = arith.constant 0 : i32
    %c0_i32_1 = arith.constant 0 : i32
    %c0_i32_2 = arith.constant 0 : i32
    return %arg0, %2, %c0_i32_0, %c0_i32_1 : i32, i32, i32, i32
  }
  func.func @transform_2(%arg0: i32, %arg1: i32) -> (i32, i32, i32, i32) {
    %c1_i32 = arith.constant 1 : i32
    %0 = arith.addi %arg1, %c1_i32 : i32
    %c2_i32 = arith.constant 2 : i32
    %1 = arith.muli %0, %c2_i32 : i32
    %c7_i32 = arith.constant 7 : i32
    %2 = arith.minsi %1, %c7_i32 : i32
    %c0_i32 = arith.constant 0 : i32
    %c0_i32_0 = arith.constant 0 : i32
    %c0_i32_1 = arith.constant 0 : i32
    return %arg0, %2, %c0_i32, %c0_i32_0 : i32, i32, i32, i32
  }
  func.func @transform_3(%arg0: i32, %arg1: i32) -> (i32, i32) {
    %c0_i32 = arith.constant 0 : i32
    %c0_i32_0 = arith.constant 0 : i32
    %c0_i32_1 = arith.constant 0 : i32
    return %c0_i32, %c0_i32_0 : i32, i32
  }
  func.func @transform_4(%arg0: i32, %arg1: i32) -> (i32, i32) {
    %c0_i32 = arith.constant 0 : i32
    %c0_i32_0 = arith.constant 0 : i32
    %c0_i32_1 = arith.constant 0 : i32
    return %c0_i32, %c0_i32_0 : i32, i32
  }
  func.func @transform_5(%arg0: i32, %arg1: i32) -> (i32, i32) {
    %c0_i32 = arith.constant 0 : i32
    %c0_i32_0 = arith.constant 0 : i32
    %c0_i32_1 = arith.constant 0 : i32
    return %c0_i32, %c0_i32_0 : i32, i32
  }
  func.func @transform_6(%arg0: i32, %arg1: i32) -> (i32, i32) {
    %c0_i32 = arith.constant 0 : i32
    %c0_i32_0 = arith.constant 0 : i32
    %c0_i32_1 = arith.constant 0 : i32
    return %c0_i32, %c0_i32_0 : i32, i32
  }
  func.func @transform_7(%arg0: i32, %arg1: i32) -> (i32, i32, i32, i32) {
    %c0_i32 = arith.constant 0 : i32
    %c0_i32_0 = arith.constant 0 : i32
    %c0_i32_1 = arith.constant 0 : i32
    return %arg0, %arg1, %c0_i32, %c0_i32_0 : i32, i32, i32, i32
  }
}

</mosaic_0001>

<llo_original>
// kernel: basic_block_forward.1
$region0: #{basic_block_forward.1}
  #allocation0 [shape = 'u32[]', space=smem, size = 0x4, offset = 0x4, fixed_abs, tag = 'smem constant byte address 0x4 - core index']
  #allocation1 [shape = 'u32[144,128]{1,0:T(1,128)}', space=vmem, size = 0x12000, scoped, tag = 'internal scratch']
  %s0 = inlined_call_operand.vmem [shape: f32[2,16,16,4], index: 0, kind: input, shape index: {}, may-alias: {0,1,2}]
  %s1 = inlined_call_operand.vmem [shape: f32[2,16,16,4], index: 1, kind: input, shape index: {}, may-alias: {0,1,2}]
  %s2 = inlined_call_operand.vmem [shape: f32[2,16,16,4], index: 2, kind: input, shape index: {}, may-alias: {0,1,2}]
  %s3 = inlined_call_operand.vmem [shape: bf16[36,4], index: 3, kind: input, shape index: {}]
  %s4 = inlined_call_operand.vmem [shape: f32[1,4], index: 4, kind: input, shape index: {}]
  %s5 = inlined_call_operand.vmem [shape: bf16[36,4], index: 5, kind: input, shape index: {}]
  %s6 = inlined_call_operand.vmem [shape: f32[1,4], index: 6, kind: input, shape index: {}]
  %s7 = inlined_call_operand.vmem [shape: f32[2,16,16,4], index: 7, kind: output, shape index: {}]
  %s8 = sld [smem:[#allocation0]]
  $region61: #{basic_block_forward.1} parent=0
    _
  %s10 = ssub.s32 1, %s8
  %s11 = scalar_select 0, %s10, %s8
  loop: start=0, step=1, limit=10
  $region2: #{basic_block_forward.1} parent=0 // loop_pre_header
    _
  $region3: #{basic_block_forward.1} parent=0 // loop_header
    %s13 = sphi 0, %s17
    %p14 = scmp.ge.s32.totalorder %s13, 10
    %s20 = sphi 0, %s32
    %s21 = sphi 0, %s28
    %s22 = sphi 0, %s20
    %s23 = sphi 0, %s21
    %s24 = sphi 0, %s22
    %s25 = sphi 0, %s23
    %s37 = sphi 0, %s39
    %s40 = sphi 0, %s37
    %s41 = sphi 0, %s40
    %s57 = sphi 0, %s41
    %s73 = sphi 0, %s75
    %s76 = sphi 0, %s73
    %s77 = sphi 0, %s76
    %s93 = sphi 0, %s77
    %s109 = sphi 0, %s111
    %s112 = sphi 0, %s109
    %s113 = sphi 0, %s112
    %s129 = sphi 0, %s113
    %s133 = sphi 0, %s133
    %s135 = sphi 0, %s133
    %s136 = sphi 0, %s135
    %s150 = sphi 0, %s136
    %s154 = sphi 0, %s154
    %s156 = sphi 0, %s154
    %s157 = sphi 0, %s156
    %s171 = sphi 0, %s157
    %s175 = sphi 0, %s175
    %s177 = sphi 0, %s175
    %s178 = sphi 0, %s177
    %s192 = sphi 0, %s178
    %s196 = sphi 0, %s196
    %s198 = sphi 0, %s196
    %s199 = sphi 0, %s198
    %s213 = sphi 0, %s199
    %s221 = sphi 0, %s223
    %s224 = sphi 0, %s221
    %s225 = sphi 0, %s224
    %s241 = sphi 0, %s225
  $region4: #{basic_block_forward.1} parent=0 // loop_header_branch
    %16 = sbr.rel (%p14) target = $region8
  $region5: #{basic_block_forward.1} parent=0 // loop_body
    %s18 = ssub.s32 %s13, 1
    %s19 = ssub.s32 %s13, 2
    %s26 = sadd.s32 1, %s21
    %p27 = scmp.ge.s32.totalorder %s26, 4
    %s28 = scalar_select %p27, 0, %s26
    %s29 = sadd.s32 1, %s20
    %s30 = scalar_select %p27, %s29, %s20
    %p31 = scmp.ge.s32.totalorder %s30, 2
    %s32 = scalar_select %p31, 0, %s30
    %s33 = ssub.s32 %s20, %s32
    %s34 = ssub.s32 %s21, %s28
    %s35 = sor.u32 %s33, %s34
    %p36 = scmp.eq.s32.totalorder %s35, 0
    %s38 = sadd.s32 %s37, 1
    %s39 = scalar_select %p36, %s37, %s38
    %p42 = pneg %p36
    %p43 = scmp.eq.s32.totalorder %s13, 7
    %p44 = por %p42, %p43
    %p45 = scmp.ne.s32.totalorder %s37, %s40
    %p46 = scmp.eq.s32.totalorder %s13, 0
    %p47 = por %p45, %p46
    %p48 = scmp.ne.s32.totalorder %s37, %s40
    %p49 = scmp.eq.s32.totalorder %s18, 7
    %p50 = por %p48, %p49
    %p51 = scmp.ne.s32.totalorder %s40, %s41
    %p52 = scmp.eq.s32.totalorder %s18, 0
    %p53 = por %p51, %p52
    %p54 = scmp.ne.s32.totalorder %s40, %s41
    %p55 = scmp.eq.s32.totalorder %s19, 7
    %p56 = por %p54, %p55
    %p58 = scmp.ne.s32.totalorder %s41, %s57
    %p59 = scmp.eq.s32.totalorder %s19, 0
    %p60 = por %p58, %p59
    %s61 = smul.u32 %s21, 2
    %s62 = ssub.s32 %s61, 1
    %p63 = scmp.gt.s32.totalorder %s62, 0
    %s64 = scalar_select %p63, %s62, 0
    %s65 = smul.u32 %s28, 2
    %s66 = ssub.s32 %s65, 1
    %p67 = scmp.gt.s32.totalorder %s66, 0
    %s68 = scalar_select %p67, %s66, 0
    %s69 = ssub.s32 %s20, %s32
    %s70 = ssub.s32 %s64, %s68
    %s71 = sor.u32 %s69, %s70
    %p72 = scmp.eq.s32.totalorder %s71, 0
    %s74 = sadd.s32 %s73, 1
    %s75 = scalar_select %p72, %s73, %s74
    %p78 = pneg %p72
    %p79 = scmp.eq.s32.totalorder %s13, 7
    %p80 = por %p78, %p79
    %p81 = scmp.ne.s32.totalorder %s73, %s76
    %p82 = scmp.eq.s32.totalorder %s13, 0
    %p83 = por %p81, %p82
    %p84 = scmp.ne.s32.totalorder %s73, %s76
    %p85 = scmp.eq.s32.totalorder %s18, 7
    %p86 = por %p84, %p85
    %p87 = scmp.ne.s32.totalorder %s76, %s77
    %p88 = scmp.eq.s32.totalorder %s18, 0
    %p89 = por %p87, %p88
    %p90 = scmp.ne.s32.totalorder %s76, %s77
    %p91 = scmp.eq.s32.totalorder %s19, 7
    %p92 = por %p90, %p91
    %p94 = scmp.ne.s32.totalorder %s77, %s93
    %p95 = scmp.eq.s32.totalorder %s19, 0
    %p96 = por %p94, %p95
    %s97 = sadd.s32 %s21, 1
    %s98 = smul.u32 %s97, 2
    %p99 = scmp.lt.s32.totalorder %s98, 7
    %s100 = scalar_select %p99, %s98, 7
    %s101 = sadd.s32 %s28, 1
    %s102 = smul.u32 %s101, 2
    %p103 = scmp.lt.s32.totalorder %s102, 7
    %s104 = scalar_select %p103, %s102, 7
    %s105 = ssub.s32 %s20, %s32
    %s106 = ssub.s32 %s100, %s104
    %s107 = sor.u32 %s105, %s106
    %p108 = scmp.eq.s32.totalorder %s107, 0
    %s110 = sadd.s32 %s109, 1
    %s111 = scalar_select %p108, %s109, %s110
    %p114 = pneg %p108
    %p115 = scmp.eq.s32.totalorder %s13, 7
    %p116 = por %p114, %p115
    %p117 = scmp.ne.s32.totalorder %s109, %s112
    %p118 = scmp.eq.s32.totalorder %s13, 0
    %p119 = por %p117, %p118
    %p120 = scmp.ne.s32.totalorder %s109, %s112
    %p121 = scmp.eq.s32.totalorder %s18, 7
    %p122 = por %p120, %p121
    %p123 = scmp.ne.s32.totalorder %s112, %s113
    %p124 = scmp.eq.s32.totalorder %s18, 0
    %p125 = por %p123, %p124
    %p126 = scmp.ne.s32.totalorder %s112, %s113
    %p127 = scmp.eq.s32.totalorder %s19, 7
    %p128 = por %p126, %p127
    %p130 = scmp.ne.s32.totalorder %s113, %s129
    %p131 = scmp.eq.s32.totalorder %s19, 0
    %p132 = por %p130, %p131
    %s134 = sadd.s32 %s133, 1
    %p137 = scmp.eq.s32.totalorder %s13, 7
    %p138 = scmp.ne.s32.totalorder %s133, %s135
    %p139 = scmp.eq.s32.totalorder %s13, 0
    %p140 = por %p138, %p139
    %p141 = scmp.ne.s32.totalorder %s133, %s135
    %p142 = scmp.eq.s32.totalorder %s18, 7
    %p143 = por %p141, %p142
    %p144 = scmp.ne.s32.totalorder %s135, %s136
    %p145 = scmp.eq.s32.totalorder %s18, 0
    %p146 = por %p144, %p145
    %p147 = scmp.ne.s32.totalorder %s135, %s136
    %p148 = scmp.eq.s32.totalorder %s19, 7
    %p149 = por %p147, %p148
    %p151 = scmp.ne.s32.totalorder %s136, %s150
    %p152 = scmp.eq.s32.totalorder %s19, 0
    %p153 = por %p151, %p152
    %s155 = sadd.s32 %s154, 1
    %p158 = scmp.eq.s32.totalorder %s13, 7
    %p159 = scmp.ne.s32.totalorder %s154, %s156
    %p160 = scmp.eq.s32.totalorder %s13, 0
    %p161 = por %p159, %p160
    %p162 = scmp.ne.s32.totalorder %s154, %s156
    %p163 = scmp.eq.s32.totalorder %s18, 7
    %p164 = por %p162, %p163
    %p165 = scmp.ne.s32.totalorder %s156, %s157
    %p166 = scmp.eq.s32.totalorder %s18, 0
    %p167 = por %p165, %p166
    %p168 = scmp.ne.s32.totalorder %s156, %s157
    %p169 = scmp.eq.s32.totalorder %s19, 7
    %p170 = por %p168, %p169
    %p172 = scmp.ne.s32.totalorder %s157, %s171
    %p173 = scmp.eq.s32.totalorder %s19, 0
    %p174 = por %p172, %p173
    %s176 = sadd.s32 %s175, 1
    %p179 = scmp.eq.s32.totalorder %s13, 7
    %p180 = scmp.ne.s32.totalorder %s175, %s177
    %p181 = scmp.eq.s32.totalorder %s13, 0
    %p182 = por %p180, %p181
    %p183 = scmp.ne.s32.totalorder %s175, %s177
    %p184 = scmp.eq.s32.totalorder %s18, 7
    %p185 = por %p183, %p184
    %p186 = scmp.ne.s32.totalorder %s177, %s178
    %p187 = scmp.eq.s32.totalorder %s18, 0
    %p188 = por %p186, %p187
    %p189 = scmp.ne.s32.totalorder %s177, %s178
    %p190 = scmp.eq.s32.totalorder %s19, 7
    %p191 = por %p189, %p190
    %p193 = scmp.ne.s32.totalorder %s178, %s192
    %p194 = scmp.eq.s32.totalorder %s19, 0
    %p195 = por %p193, %p194
    %s197 = sadd.s32 %s196, 1
    %p200 = scmp.eq.s32.totalorder %s13, 7
    %p201 = scmp.ne.s32.totalorder %s196, %s198
    %p202 = scmp.eq.s32.totalorder %s13, 0
    %p203 = por %p201, %p202
    %p204 = scmp.ne.s32.totalorder %s196, %s198
    %p205 = scmp.eq.s32.totalorder %s18, 7
    %p206 = por %p204, %p205
    %p207 = scmp.ne.s32.totalorder %s198, %s199
    %p208 = scmp.eq.s32.totalorder %s18, 0
    %p209 = por %p207, %p208
    %p210 = scmp.ne.s32.totalorder %s198, %s199
    %p211 = scmp.eq.s32.totalorder %s19, 7
    %p212 = por %p210, %p211
    %p214 = scmp.ne.s32.totalorder %s199, %s213
    %p215 = scmp.eq.s32.totalorder %s19, 0
    %p216 = por %p214, %p215
    %s217 = ssub.s32 %s20, %s32
    %s218 = ssub.s32 %s21, %s28
    %s219 = sor.u32 %s217, %s218
    %p220 = scmp.eq.s32.totalorder %s219, 0
    %s222 = sadd.s32 %s221, 1
    %s223 = scalar_select %p220, %s221, %s222
    %p226 = pneg %p220
    %p227 = scmp.eq.s32.totalorder %s13, 7
    %p228 = por %p226, %p227
    %p229 = scmp.ne.s32.totalorder %s221, %s224
    %p230 = scmp.eq.s32.totalorder %s13, 0
    %p231 = por %p229, %p230
    %p232 = scmp.ne.s32.totalorder %s221, %s224
    %p233 = scmp.eq.s32.totalorder %s18, 7
    %p234 = por %p232, %p233
    %p235 = scmp.ne.s32.totalorder %s224, %s225
    %p236 = scmp.eq.s32.totalorder %s18, 0
    %p237 = por %p235, %p236
    %p238 = scmp.ne.s32.totalorder %s224, %s225
    %p239 = scmp.eq.s32.totalorder %s19, 7
    %p240 = por %p238, %p239
    %p242 = scmp.ne.s32.totalorder %s225, %s241
    %p243 = scmp.eq.s32.totalorder %s19, 0
    %p244 = por %p242, %p243
    %p245 = scmp.le.s32.totalorder 1, %s13
    %p246 = scmp.lt.s32.totalorder %s13, 9
    %p247 = pnand %p245, %p246
    %p248 = pneg %p247
    // Predicated region
    $region9: #{basic_block_forward.1} parent=5 // pred_check
      _
    $region10: #{basic_block_forward.1} parent=5 // pred_check_branch
      %250 = sbr.rel (%p247) target = $region12
    $region11: #{basic_block_forward.1} parent=5 // pred_region
      %s251 = ssub.s32 %s13, 1
      // Predicated region
      $region13: #{basic_block_forward.1} parent=11 // pred_check
        %p252 = pneg %p146
      $region14: #{basic_block_forward.1} parent=11 // pred_check_branch
        %254 = sbr.rel (%p252) target = $region16
      $region15: #{basic_block_forward.1} parent=11 // pred_region
        _
      $region16: #{basic_block_forward.1} parent=11 // pred_fallthru
        _
      // Predicated region
      $region17: #{basic_block_forward.1} parent=11 // pred_check
        %p255 = pneg %p167
      $region18: #{basic_block_forward.1} parent=11 // pred_check_branch
        %257 = sbr.rel (%p255) target = $region20
      $region19: #{basic_block_forward.1} parent=11 // pred_region
        _
      $region20: #{basic_block_forward.1} parent=11 // pred_fallthru
        _
      // Predicated region
      $region21: #{basic_block_forward.1} parent=11 // pred_check
        %p258 = pneg %p188
      $region22: #{basic_block_forward.1} parent=11 // pred_check_branch
        %260 = sbr.rel (%p258) target = $region24
      $region23: #{basic_block_forward.1} parent=11 // pred_region
        _
      $region24: #{basic_block_forward.1} parent=11 // pred_fallthru
        _
      // Predicated region
      $region25: #{basic_block_forward.1} parent=11 // pred_check
        %p261 = pneg %p209
      $region26: #{basic_block_forward.1} parent=11 // pred_check_branch
        %263 = sbr.rel (%p261) target = $region28
      $region27: #{basic_block_forward.1} parent=11 // pred_region
        _
      $region28: #{basic_block_forward.1} parent=11 // pred_fallthru
        _
    $region12: #{basic_block_forward.1} parent=5 // pred_fallthru
      _
    %p264 = scmp.lt.s32.totalorder %s13, 8
    // Predicated region
    $region29: #{basic_block_forward.1} parent=5 // pred_check
      %p265 = pneg %p264
    $region30: #{basic_block_forward.1} parent=5 // pred_check_branch
      %267 = sbr.rel (%p265) target = $region32
    $region31: #{basic_block_forward.1} parent=5 // pred_region
      // Predicated region
      $region33: #{basic_block_forward.1} parent=31 // pred_check
        %p268 = pneg %p47
      $region34: #{basic_block_forward.1} parent=31 // pred_check_branch
        %270 = sbr.rel (%p268) target = $region36
      $region35: #{basic_block_forward.1} parent=31 // pred_region
        %s271 = smul.u32 4, %s21
        %p272 = scmp.lt.s32.totalorder %s20, 1
        %s273 = scalar_select %p272, %s20, 1
        %p274 = scmp.lt.s32.totalorder %s271, 15
        %s275 = scalar_select %p274, %s271, 15
        %s276 = smul.addr %s275, 2
        %s277 = smul.addr %s273, 32
        %s278 = sadd.s32 %s276, %s277
        %s279 = smul.addr %s278, 8
        %s280 = scalar_lea.vmem %s0, %s279
        %s281 = smul.u32 4, %s21
      $region36: #{basic_block_forward.1} parent=31 // pred_fallthru
        _
      // Predicated region
      $region37: #{basic_block_forward.1} parent=31 // pred_check
        %p282 = pneg %p83
      $region38: #{basic_block_forward.1} parent=31 // pred_check_branch
        %284 = sbr.rel (%p282) target = $region40
      $region39: #{basic_block_forward.1} parent=31 // pred_region
        %s285 = smul.u32 %s21, 2
        %s286 = ssub.s32 %s285, 1
        %p287 = scmp.gt.s32.totalorder %s286, 0
        %s288 = scalar_select %p287, %s286, 0
        %s289 = smul.u32 2, %s288
        %p290 = scmp.lt.s32.totalorder %s20, 1
        %s291 = scalar_select %p290, %s20, 1
        %p292 = scmp.lt.s32.totalorder %s289, 15
        %s293 = scalar_select %p292, %s289, 15
        %s294 = smul.addr %s293, 2
        %s295 = smul.addr %s291, 32
        %s296 = sadd.s32 %s294, %s295
        %s297 = smul.addr %s296, 8
        %s298 = scalar_lea.vmem %s1, %s297
        %s299 = smul.u32 %s21, 2
        %s300 = ssub.s32 %s299, 1
        %p301 = scmp.gt.s32.totalorder %s300, 0
        %s302 = scalar_select %p301, %s300, 0
        %s303 = smul.u32 2, %s302
      $region40: #{basic_block_forward.1} parent=31 // pred_fallthru
        _
      // Predicated region
      $region41: #{basic_block_forward.1} parent=31 // pred_check
        %p304 = pneg %p119
      $region42: #{basic_block_forward.1} parent=31 // pred_check_branch
        %306 = sbr.rel (%p304) target = $region44
      $region43: #{basic_block_forward.1} parent=31 // pred_region
        %s307 = sadd.s32 %s21, 1
        %s308 = smul.u32 %s307, 2
        %p309 = scmp.lt.s32.totalorder %s308, 7
        %s310 = scalar_select %p309, %s308, 7
        %s311 = smul.u32 2, %s310
        %p312 = scmp.lt.s32.totalorder %s20, 1
        %s313 = scalar_select %p312, %s20, 1
        %p314 = scmp.lt.s32.totalorder %s311, 15
        %s315 = scalar_select %p314, %s311, 15
        %s316 = smul.addr %s315, 2
        %s317 = smul.addr %s313, 32
        %s318 = sadd.s32 %s316, %s317
        %s319 = smul.addr %s318, 8
        %s320 = scalar_lea.vmem %s2, %s319
        %s321 = sadd.s32 %s21, 1
        %s322 = smul.u32 %s321, 2
        %p323 = scmp.lt.s32.totalorder %s322, 7
        %s324 = scalar_select %p323, %s322, 7
        %s325 = smul.u32 2, %s324
      $region44: #{basic_block_forward.1} parent=31 // pred_fallthru
        _
    $region32: #{basic_block_forward.1} parent=5 // pred_fallthru
      _
    %p326 = scmp.le.s32.totalorder 1, %s13
    %p327 = scmp.lt.s32.totalorder %s13, 9
    %p328 = pnand %p326, %p327
    %p329 = pneg %p328
    // Predicated region
    $region45: #{basic_block_forward.1} parent=5 // pred_check
      _
    $region46: #{basic_block_forward.1} parent=5 // pred_check_branch
      %331 = sbr.rel (%p328) target = $region48
    $region47: #{basic_block_forward.1} parent=5 // pred_region
      %s332 = ssub.s32 %s13, 1
      %s333 = smul.u32 4, %s23
      %p334 = scmp.lt.s32.totalorder %s22, 1
      %s335 = scalar_select %p334, %s22, 1
      %p336 = scmp.lt.s32.totalorder %s333, 15
      %s337 = scalar_select %p336, %s333, 15
      %s338 = smul.addr %s337, 2
      %s339 = smul.addr %s335, 32
      %s340 = sadd.s32 %s338, %s339
      %s341 = smul.addr %s340, 8
      %s342 = scalar_lea.vmem %s0, %s341
      %p343 = pneg %p53
      %p344 = pneg %p50
      %s345 = smul.u32 %s23, 2
      %s346 = ssub.s32 %s345, 1
      %p347 = scmp.gt.s32.totalorder %s346, 0
      %s348 = scalar_select %p347, %s346, 0
      %s349 = smul.u32 2, %s348
      %p350 = scmp.lt.s32.totalorder %s22, 1
      %s351 = scalar_select %p350, %s22, 1
      %p352 = scmp.lt.s32.totalorder %s349, 15
      %s353 = scalar_select %p352, %s349, 15
      %s354 = smul.addr %s353, 2
      %s355 = smul.addr %s351, 32
      %s356 = sadd.s32 %s354, %s355
      %s357 = smul.addr %s356, 8
      %s358 = scalar_lea.vmem %s1, %s357
      %p359 = pneg %p89
      %p360 = pneg %p86
      %s361 = sadd.s32 %s23, 1
      %s362 = smul.u32 %s361, 2
      %p363 = scmp.lt.s32.totalorder %s362, 7
      %s364 = scalar_select %p363, %s362, 7
      %s365 = smul.u32 2, %s364
      %p366 = scmp.lt.s32.totalorder %s22, 1
      %s367 = scalar_select %p366, %s22, 1
      %p368 = scmp.lt.s32.totalorder %s365, 15
      %s369 = scalar_select %p368, %s365, 15
      %s370 = smul.addr %s369, 2
      %s371 = smul.addr %s367, 32
      %s372 = sadd.s32 %s370, %s371
      %s373 = smul.addr %s372, 8
      %s374 = scalar_lea.vmem %s2, %s373
      %p375 = pneg %p125
      %p376 = pneg %p122
      %p377 = pneg %p146
      %p378 = pneg %p143
      %p379 = pneg %p167
      %p380 = pneg %p164
      %p381 = pneg %p188
      %p382 = pneg %p185
      %p383 = pneg %p209
      %p384 = pneg %p206
      %p385 = pneg %p237
      %p386 = pneg %p234
      %s387 = smul.u32 4, %s23
      %p388 = scmp.lt.s32.totalorder %s22, 1
      %s389 = scalar_select %p388, %s22, 1
      %p390 = scmp.lt.s32.totalorder %s387, 15
      %s391 = scalar_select %p390, %s387, 15
      %s392 = smul.addr %s391, 2
      %s393 = smul.addr %s389, 32
      %s394 = sadd.s32 %s392, %s393
      %s395 = smul.addr %s394, 8
      %s396 = scalar_lea.vmem %s7, %s395
      %s397 = smul.u32 4, %s23
      %p398 = scmp.lt.s32.totalorder %s22, 1
      %s399 = scalar_select %p398, %s22, 1
      %p400 = scmp.lt.s32.totalorder %s397, 15
      %s401 = scalar_select %p400, %s397, 15
      %s402 = smul.addr %s401, 2
      %s403 = smul.addr %s399, 32
      %s404 = sadd.s32 %s402, %s403
      %s405 = smul.addr %s404, 8
      %s406 = scalar_lea.vmem %s0, %s405
      %s407 = smul.u32 4, %s23
      %s408 = smul.u32 %s23, 2
      %s409 = ssub.s32 %s408, 1
      %p410 = scmp.gt.s32.totalorder %s409, 0
      %s411 = scalar_select %p410, %s409, 0
      %s412 = smul.u32 2, %s411
      %p413 = scmp.lt.s32.totalorder %s22, 1
      %s414 = scalar_select %p413, %s22, 1
      %p415 = scmp.lt.s32.totalorder %s412, 15
      %s416 = scalar_select %p415, %s412, 15
      %s417 = smul.addr %s416, 2
      %s418 = smul.addr %s414, 32
      %s419 = sadd.s32 %s417, %s418
      %s420 = smul.addr %s419, 8
      %s421 = scalar_lea.vmem %s1, %s420
      %s422 = smul.u32 %s23, 2
      %s423 = ssub.s32 %s422, 1
      %p424 = scmp.gt.s32.totalorder %s423, 0
      %s425 = scalar_select %p424, %s423, 0
      %s426 = smul.u32 2, %s425
      %s427 = sadd.s32 %s23, 1
      %s428 = smul.u32 %s427, 2
      %p429 = scmp.lt.s32.totalorder %s428, 7
      %s430 = scalar_select %p429, %s428, 7
      %s431 = smul.u32 2, %s430
      %p432 = scmp.lt.s32.totalorder %s22, 1
      %s433 = scalar_select %p432, %s22, 1
      %p434 = scmp.lt.s32.totalorder %s431, 15
      %s435 = scalar_select %p434, %s431, 15
      %s436 = smul.addr %s435, 2
      %s437 = smul.addr %s433, 32
      %s438 = sadd.s32 %s436, %s437
      %s439 = smul.addr %s438, 8
      %s440 = scalar_lea.vmem %s2, %s439
      %s441 = sadd.s32 %s23, 1
      %s442 = smul.u32 %s441, 2
      %p443 = scmp.lt.s32.totalorder %s442, 7
      %s444 = scalar_select %p443, %s442, 7
      %s445 = smul.u32 2, %s444
      %s446 = smul.u32 4, %s23
      %p447 = scmp.lt.s32.totalorder %s22, 1
      %s448 = scalar_select %p447, %s22, 1
      %p449 = scmp.lt.s32.totalorder %s446, 15
      %s450 = scalar_select %p449, %s446, 15
      %s451 = smul.addr %s450, 2
      %s452 = smul.addr %s448, 32
      %s453 = sadd.s32 %s451, %s452
      %s454 = smul.addr %s453, 8
      %s455 = scalar_lea.vmem %s7, %s454
      %s456 = smul.u32 4, %s23
      %p458 = scmp.gt.s32.totalorder %s23, 0
      %s459 = scalar_select %p458, 1, 0
      %s460 = scvt.s32.f32 %s459
      %p461 = scmp.lt.s32.totalorder %s23, 3
      %s462 = scalar_select %p461, 1, 0
      %s463 = scvt.s32.f32 %s462
      %v464 = vld [vmem:[%s406] sm:$0xff]
      %v465 = vld [vmem:[%s406 + $0x8] sm:$0xff]
      %v466 = vld [vmem:[%s406 + $0x10] sm:$0xff]
      %v467 = vld [vmem:[%s406 + $0x18] sm:$0xff]
      %v468 = vld [vmem:[%s406 + $0x20] sm:$0xff]
      %v469 = vld [vmem:[%s406 + $0x28] sm:$0xff]
      %v470 = vld [vmem:[%s406 + $0x30] sm:$0xff]
      %v471 = vld [vmem:[%s406 + $0x38] sm:$0xff]
      %v472 = vld [vmem:[%s421] sm:$0xff]
      %v473 = vld [vmem:[%s421 + $0x8] sm:$0xff]
      %v474 = vld [vmem:[%s421 + $0x10] sm:$0xff]
      %v475 = vld [vmem:[%s421 + $0x18] sm:$0xff]
      %v476 = vstv %s460
      %v477 = vmul.f32 %v472, %v476
      %v478 = vmul.f32 %v473, %v476
      %v479 = vmul.f32 %v474, %v476
      %v480 = vmul.f32 %v475, %v476
      %v481 = vld [vmem:[%s440] sm:$0xff]
      %v482 = vld [vmem:[%s440 + $0x8] sm:$0xff]
      %v483 = vld [vmem:[%s440 + $0x10] sm:$0xff]
      %v484 = vld [vmem:[%s440 + $0x18] sm:$0xff]
      %v485 = vstv %s463
      %v486 = vmul.f32 %v481, %v485
      %v487 = vmul.f32 %v482, %v485
      %v488 = vmul.f32 %v483, %v485
      %v489 = vmul.f32 %v484, %v485
      %vm506 = vcmask 1040384
      %v507 = vrot.slane %v477, 7
      %v508 = vrot.slane %v478, 7
      %v509 = vsel %vm506, %v507, %v508
      %v510 = vrot.slane %v479, 7
      %v511 = vrot.slane %v480, 7
      %v512 = vsel %vm506, %v510, %v511
      %v513 = vrot.slane %v464, 7
      %v514 = vrot.slane %v465, 7
      %v515 = vsel %vm506, %v513, %v514
      %v516 = vrot.slane %v466, 7
      %v517 = vrot.slane %v467, 7
      %v518 = vsel %vm506, %v516, %v517
      %v519 = vrot.slane %v468, 7
      %v520 = vrot.slane %v469, 7
      %v521 = vsel %vm506, %v519, %v520
      %v522 = vrot.slane %v470, 7
      %v523 = vrot.slane %v471, 7
      %v524 = vsel %vm506, %v522, %v523
      %v525 = vrot.slane %v486, 7
      %v526 = vrot.slane %v487, 7
      %v527 = vsel %vm506, %v525, %v526
      %v528 = vrot.slane %v488, 7
      %v529 = vrot.slane %v489, 7
      %v530 = vsel %vm506, %v528, %v529
      %v553 = vsel %vm506, 0.0, %v507
      %v554 = vsel %vm506, 0.0, %v510
      %v555 = vsel %vm506, 0.0, %v513
      %v556 = vsel %vm506, 0.0, %v516
      %v557 = vsel %vm506, 0.0, %v519
      %v558 = vsel %vm506, 0.0, %v522
      %v559 = vsel %vm506, 0.0, %v525
      %v560 = vsel %vm506, 0.0, %v528
      %v561 = vsel %vm506, %v508, 0.0
      %v562 = vsel %vm506, %v511, 0.0
      %v563 = vsel %vm506, %v514, 0.0
      %v564 = vsel %vm506, %v517, 0.0
      %v565 = vsel %vm506, %v520, 0.0
      %v566 = vsel %vm506, %v523, 0.0
      %v567 = vsel %vm506, %v526, 0.0
      %v568 = vsel %vm506, %v529, 0.0
      %vm581 = vcmask 1046528
      %v582 = vrot.slane %v553, 1
      %v583 = vrot.slane %v509, 1
      %v584 = vsel %vm581, %v582, %v583
      %v585 = vrot.slane %v561, 1
      %v586 = vsel %vm581, %v583, %v585
      %v587 = vrot.slane %v554, 1
      %v588 = vrot.slane %v512, 1
      %v589 = vsel %vm581, %v587, %v588
      %v590 = vrot.slane %v562, 1
      %v591 = vsel %vm581, %v588, %v590
      %v592 = vrot.slane %v555, 1
      %v593 = vrot.slane %v515, 1
      %v594 = vsel %vm581, %v592, %v593
      %v595 = vrot.slane %v563, 1
      %v596 = vsel %vm581, %v593, %v595
      %v597 = vrot.slane %v556, 1
      %v598 = vrot.slane %v518, 1
      %v599 = vsel %vm581, %v597, %v598
      %v600 = vrot.slane %v564, 1
      %v601 = vsel %vm581, %v598, %v600
      %v602 = vrot.slane %v557, 1
      %v603 = vrot.slane %v521, 1
      %v604 = vsel %vm581, %v602, %v603
      %v605 = vrot.slane %v565, 1
      %v606 = vsel %vm581, %v603, %v605
      %v607 = vrot.slane %v558, 1
      %v608 = vrot.slane %v524, 1
      %v609 = vsel %vm581, %v607, %v608
      %v610 = vrot.slane %v566, 1
      %v611 = vsel %vm581, %v608, %v610
      %612 = vrot.lane.b32.xlu0 %v584, 4
      %v613 = vpop.permute.xlu0 %612
      %614 = vrot.lane.b32.xlu0 %v586, 4
      %v615 = vpop.permute.xlu0 %614
      %616 = vrot.lane.b32.xlu0 %v589, 4
      %v617 = vpop.permute.xlu0 %616
      %618 = vrot.lane.b32.xlu0 %v591, 4
      %v619 = vpop.permute.xlu0 %618
      %620 = vrot.lane.b32.xlu0 %v594, 4
      %v621 = vpop.permute.xlu0 %620
      %622 = vrot.lane.b32.xlu0 %v596, 4
      %v623 = vpop.permute.xlu0 %622
      %624 = vrot.lane.b32.xlu0 %v599, 4
      %v625 = vpop.permute.xlu0 %624
      %626 = vrot.lane.b32.xlu0 %v601, 4
      %v627 = vpop.permute.xlu0 %626
      %628 = vrot.lane.b32.xlu0 %v604, 4
      %v629 = vpop.permute.xlu0 %628
      %630 = vrot.lane.b32.xlu0 %v606, 4
      %v631 = vpop.permute.xlu0 %630
      %632 = vrot.lane.b32.xlu0 %v609, 4
      %v633 = vpop.permute.xlu0 %632
      %634 = vrot.lane.b32.xlu0 %v611, 4
      %v635 = vpop.permute.xlu0 %634
      %vm648 = vcmask 1045504
      %v649 = vrot.slane %v553, 2
      %v650 = vrot.slane %v509, 2
      %v651 = vsel %vm648, %v649, %v650
      %v652 = vrot.slane %v561, 2
      %v653 = vsel %vm648, %v650, %v652
      %v654 = vrot.slane %v554, 2
      %v655 = vrot.slane %v512, 2
      %v656 = vsel %vm648, %v654, %v655
      %v657 = vrot.slane %v562, 2
      %v658 = vsel %vm648, %v655, %v657
      %v659 = vrot.slane %v555, 2
      %v660 = vrot.slane %v515, 2
      %v661 = vsel %vm648, %v659, %v660
      %v662 = vrot.slane %v563, 2
      %v663 = vsel %vm648, %v660, %v662
      %v664 = vrot.slane %v556, 2
      %v665 = vrot.slane %v518, 2
      %v666 = vsel %vm648, %v664, %v665
      %v667 = vrot.slane %v564, 2
      %v668 = vsel %vm648, %v665, %v667
      %v669 = vrot.slane %v557, 2
      %v670 = vrot.slane %v521, 2
      %v671 = vsel %vm648, %v669, %v670
      %v672 = vrot.slane %v565, 2
      %v673 = vsel %vm648, %v670, %v672
      %v674 = vrot.slane %v558, 2
      %v675 = vrot.slane %v524, 2
      %v676 = vsel %vm648, %v674, %v675
      %v677 = vrot.slane %v566, 2
      %v678 = vsel %vm648, %v675, %v677
      %679 = vrot.lane.b32.xlu0 %v651, 8
      %v680 = vpop.permute.xlu0 %679
      %681 = vrot.lane.b32.xlu0 %v653, 8
      %v682 = vpop.permute.xlu0 %681
      %683 = vrot.lane.b32.xlu0 %v656, 8
      %v684 = vpop.permute.xlu0 %683
      %685 = vrot.lane.b32.xlu0 %v658, 8
      %v686 = vpop.permute.xlu0 %685
      %687 = vrot.lane.b32.xlu0 %v661, 8
      %v688 = vpop.permute.xlu0 %687
      %689 = vrot.lane.b32.xlu0 %v663, 8
      %v690 = vpop.permute.xlu0 %689
      %691 = vrot.lane.b32.xlu0 %v666, 8
      %v692 = vpop.permute.xlu0 %691
      %693 = vrot.lane.b32.xlu0 %v668, 8
      %v694 = vpop.permute.xlu0 %693
      %695 = vrot.lane.b32.xlu0 %v671, 8
      %v696 = vpop.permute.xlu0 %695
      %697 = vrot.lane.b32.xlu0 %v673, 8
      %v698 = vpop.permute.xlu0 %697
      %699 = vrot.lane.b32.xlu0 %v676, 8
      %v700 = vpop.permute.xlu0 %699
      %701 = vrot.lane.b32.xlu0 %v678, 8
      %v702 = vpop.permute.xlu0 %701
      %716 = vrot.lane.b32.xlu0 %v554, 12
      %v717 = vpop.permute.xlu0 %716
      %718 = vrot.lane.b32.xlu0 %v512, 12
      %v719 = vpop.permute.xlu0 %718
      %720 = vrot.lane.b32.xlu0 %v555, 12
      %v721 = vpop.permute.xlu0 %720
      %722 = vrot.lane.b32.xlu0 %v515, 12
      %v723 = vpop.permute.xlu0 %722
      %724 = vrot.lane.b32.xlu0 %v556, 12
      %v725 = vpop.permute.xlu0 %724
      %726 = vrot.lane.b32.xlu0 %v518, 12
      %v727 = vpop.permute.xlu0 %726
      %728 = vrot.lane.b32.xlu0 %v557, 12
      %v729 = vpop.permute.xlu0 %728
      %730 = vrot.lane.b32.xlu0 %v521, 12
      %v731 = vpop.permute.xlu0 %730
      %732 = vrot.lane.b32.xlu0 %v558, 12
      %v733 = vpop.permute.xlu0 %732
      %734 = vrot.lane.b32.xlu0 %v524, 12
      %v735 = vpop.permute.xlu0 %734
      %736 = vrot.lane.b32.xlu0 %v559, 12
      %v737 = vpop.permute.xlu0 %736
      %738 = vrot.lane.b32.xlu0 %v527, 12
      %v739 = vpop.permute.xlu0 %738
      %v753 = vrot.slane %v559, 1
      %v754 = vrot.slane %v527, 1
      %v755 = vsel %vm581, %v753, %v754
      %v756 = vrot.slane %v567, 1
      %v757 = vsel %vm581, %v754, %v756
      %758 = vrot.lane.b32.xlu0 %v589, 16
      %v759 = vpop.permute.xlu0 %758
      %760 = vrot.lane.b32.xlu0 %v591, 16
      %v761 = vpop.permute.xlu0 %760
      %762 = vrot.lane.b32.xlu0 %v594, 16
      %v763 = vpop.permute.xlu0 %762
      %764 = vrot.lane.b32.xlu0 %v596, 16
      %v765 = vpop.permute.xlu0 %764
      %766 = vrot.lane.b32.xlu0 %v599, 16
      %v767 = vpop.permute.xlu0 %766
      %768 = vrot.lane.b32.xlu0 %v601, 16
      %v769 = vpop.permute.xlu0 %768
      %770 = vrot.lane.b32.xlu0 %v604, 16
      %v771 = vpop.permute.xlu0 %770
      %772 = vrot.lane.b32.xlu0 %v606, 16
      %v773 = vpop.permute.xlu0 %772
      %774 = vrot.lane.b32.xlu0 %v609, 16
      %v775 = vpop.permute.xlu0 %774
      %776 = vrot.lane.b32.xlu0 %v611, 16
      %v777 = vpop.permute.xlu0 %776
      %778 = vrot.lane.b32.xlu0 %v755, 16
      %v779 = vpop.permute.xlu0 %778
      %780 = vrot.lane.b32.xlu0 %v757, 16
      %v781 = vpop.permute.xlu0 %780
      %v794 = vrot.slane %v559, 2
      %v795 = vrot.slane %v527, 2
      %v796 = vsel %vm648, %v794, %v795
      %v797 = vrot.slane %v567, 2
      %v798 = vsel %vm648, %v795, %v797
      %799 = vrot.lane.b32.xlu0 %v656, 20
      %v800 = vpop.permute.xlu0 %799
      %801 = vrot.lane.b32.xlu0 %v658, 20
      %v802 = vpop.permute.xlu0 %801
      %803 = vrot.lane.b32.xlu0 %v661, 20
      %v804 = vpop.permute.xlu0 %803
      %805 = vrot.lane.b32.xlu0 %v663, 20
      %v806 = vpop.permute.xlu0 %805
      %807 = vrot.lane.b32.xlu0 %v666, 20
      %v808 = vpop.permute.xlu0 %807
      %809 = vrot.lane.b32.xlu0 %v668, 20
      %v810 = vpop.permute.xlu0 %809
      %811 = vrot.lane.b32.xlu0 %v671, 20
      %v812 = vpop.permute.xlu0 %811
      %813 = vrot.lane.b32.xlu0 %v673, 20
      %v814 = vpop.permute.xlu0 %813
      %815 = vrot.lane.b32.xlu0 %v676, 20
      %v816 = vpop.permute.xlu0 %815
      %817 = vrot.lane.b32.xlu0 %v678, 20
      %v818 = vpop.permute.xlu0 %817
      %819 = vrot.lane.b32.xlu0 %v796, 20
      %v820 = vpop.permute.xlu0 %819
      %821 = vrot.lane.b32.xlu0 %v798, 20
      %v822 = vpop.permute.xlu0 %821
      %836 = vrot.lane.b32.xlu0 %v555, 24
      %v837 = vpop.permute.xlu0 %836
      %838 = vrot.lane.b32.xlu0 %v515, 24
      %v839 = vpop.permute.xlu0 %838
      %840 = vrot.lane.b32.xlu0 %v556, 24
      %v841 = vpop.permute.xlu0 %840
      %842 = vrot.lane.b32.xlu0 %v518, 24
      %v843 = vpop.permute.xlu0 %842
      %844 = vrot.lane.b32.xlu0 %v557, 24
      %v845 = vpop.permute.xlu0 %844
      %846 = vrot.lane.b32.xlu0 %v521, 24
      %v847 = vpop.permute.xlu0 %846
      %848 = vrot.lane.b32.xlu0 %v558, 24
      %v849 = vpop.permute.xlu0 %848
      %850 = vrot.lane.b32.xlu0 %v524, 24
      %v851 = vpop.permute.xlu0 %850
      %852 = vrot.lane.b32.xlu0 %v559, 24
      %v853 = vpop.permute.xlu0 %852
      %854 = vrot.lane.b32.xlu0 %v527, 24
      %v855 = vpop.permute.xlu0 %854
      %856 = vrot.lane.b32.xlu0 %v560, 24
      %v857 = vpop.permute.xlu0 %856
      %858 = vrot.lane.b32.xlu0 %v530, 24
      %v859 = vpop.permute.xlu0 %858
      %v873 = vrot.slane %v560, 1
      %v874 = vrot.slane %v530, 1
      %v875 = vsel %vm581, %v873, %v874
      %v876 = vrot.slane %v568, 1
      %v877 = vsel %vm581, %v874, %v876
      %878 = vrot.lane.b32.xlu0 %v594, 28
      %v879 = vpop.permute.xlu0 %878
      %880 = vrot.lane.b32.xlu0 %v596, 28
      %v881 = vpop.permute.xlu0 %880
      %882 = vrot.lane.b32.xlu0 %v599, 28
      %v883 = vpop.permute.xlu0 %882
      %884 = vrot.lane.b32.xlu0 %v601, 28
      %v885 = vpop.permute.xlu0 %884
      %886 = vrot.lane.b32.xlu0 %v604, 28
      %v887 = vpop.permute.xlu0 %886
      %888 = vrot.lane.b32.xlu0 %v606, 28
      %v889 = vpop.permute.xlu0 %888
      %890 = vrot.lane.b32.xlu0 %v609, 28
      %v891 = vpop.permute.xlu0 %890
      %892 = vrot.lane.b32.xlu0 %v611, 28
      %v893 = vpop.permute.xlu0 %892
      %894 = vrot.lane.b32.xlu0 %v755, 28
      %v895 = vpop.permute.xlu0 %894
      %896 = vrot.lane.b32.xlu0 %v757, 28
      %v897 = vpop.permute.xlu0 %896
      %898 = vrot.lane.b32.xlu0 %v875, 28
      %v899 = vpop.permute.xlu0 %898
      %900 = vrot.lane.b32.xlu0 %v877, 28
      %v901 = vpop.permute.xlu0 %900
      %v914 = vrot.slane %v560, 2
      %v915 = vrot.slane %v530, 2
      %v916 = vsel %vm648, %v914, %v915
      %v917 = vrot.slane %v568, 2
      %v918 = vsel %vm648, %v915, %v917
      %919 = vrot.lane.b32.xlu0 %v661, 32
      %v920 = vpop.permute.xlu0 %919
      %921 = vrot.lane.b32.xlu0 %v663, 32
      %v922 = vpop.permute.xlu0 %921
      %923 = vrot.lane.b32.xlu0 %v666, 32
      %v924 = vpop.permute.xlu0 %923
      %925 = vrot.lane.b32.xlu0 %v668, 32
      %v926 = vpop.permute.xlu0 %925
      %927 = vrot.lane.b32.xlu0 %v671, 32
      %v928 = vpop.permute.xlu0 %927
      %929 = vrot.lane.b32.xlu0 %v673, 32
      %v930 = vpop.permute.xlu0 %929
      %931 = vrot.lane.b32.xlu0 %v676, 32
      %v932 = vpop.permute.xlu0 %931
      %933 = vrot.lane.b32.xlu0 %v678, 32
      %v934 = vpop.permute.xlu0 %933
      %935 = vrot.lane.b32.xlu0 %v796, 32
      %v936 = vpop.permute.xlu0 %935
      %937 = vrot.lane.b32.xlu0 %v798, 32
      %v938 = vpop.permute.xlu0 %937
      %939 = vrot.lane.b32.xlu0 %v916, 32
      %v940 = vpop.permute.xlu0 %939
      %941 = vrot.lane.b32.xlu0 %v918, 32
      %v942 = vpop.permute.xlu0 %941
      %vm955 = vcmask 31744
      %v956 = vsel %vm955, %v553, %v613
      %v957 = vsel %vm955, %v509, %v615
      %v958 = vsel %vm955, %v554, %v617
      %v959 = vsel %vm955, %v512, %v619
      %v960 = vsel %vm955, %v555, %v621
      %v961 = vsel %vm955, %v515, %v623
      %v962 = vsel %vm955, %v556, %v625
      %v963 = vsel %vm955, %v518, %v627
      %v964 = vsel %vm955, %v557, %v629
      %v965 = vsel %vm955, %v521, %v631
      %v966 = vsel %vm955, %v558, %v633
      %v967 = vsel %vm955, %v524, %v635
      %vm968 = vcmask 64512
      %v969 = vsel %vm968, %v956, %v680
      %v970 = vsel %vm968, %v957, %v682
      %v971 = vsel %vm968, %v958, %v684
      %v972 = vsel %vm968, %v959, %v686
      %v973 = vsel %vm968, %v960, %v688
      %v974 = vsel %vm968, %v961, %v690
      %v975 = vsel %vm968, %v962, %v692
      %v976 = vsel %vm968, %v963, %v694
      %v977 = vsel %vm968, %v964, %v696
      %v978 = vsel %vm968, %v965, %v698
      %v979 = vsel %vm968, %v966, %v700
      %v980 = vsel %vm968, %v967, %v702
      %vm981 = vcmask 97280
      %v982 = vsel %vm981, %v969, %v717
      %v983 = vsel %vm981, %v970, %v719
      %v984 = vsel %vm981, %v971, %v721
      %v985 = vsel %vm981, %v972, %v723
      %v986 = vsel %vm981, %v973, %v725
      %v987 = vsel %vm981, %v974, %v727
      %v988 = vsel %vm981, %v975, %v729
      %v989 = vsel %vm981, %v976, %v731
      %v990 = vsel %vm981, %v977, %v733
      %v991 = vsel %vm981, %v978, %v735
      %v992 = vsel %vm981, %v979, %v737
      %v993 = vsel %vm981, %v980, %v739
      %vm994 = vcmask 130048
      %v995 = vsel %vm994, %v982, %v759
      %v996 = vsel %vm994, %v983, %v761
      %v997 = vsel %vm994, %v984, %v763
      %v998 = vsel %vm994, %v985, %v765
      %v999 = vsel %vm994, %v986, %v767
      %v1000 = vsel %vm994, %v987, %v769
      %v1001 = vsel %vm994, %v988, %v771
      %v1002 = vsel %vm994, %v989, %v773
      %v1003 = vsel %vm994, %v990, %v775
      %v1004 = vsel %vm994, %v991, %v777
      %v1005 = vsel %vm994, %v992, %v779
      %v1006 = vsel %vm994, %v993, %v781
      %vm1007 = vcmask 162816
      %v1008 = vsel %vm1007, %v995, %v800
      %v1009 = vsel %vm1007, %v996, %v802
      %v1010 = vsel %vm1007, %v997, %v804
      %v1011 = vsel %vm1007, %v998, %v806
      %v1012 = vsel %vm1007, %v999, %v808
      %v1013 = vsel %vm1007, %v1000, %v810
      %v1014 = vsel %vm1007, %v1001, %v812
      %v1015 = vsel %vm1007, %v1002, %v814
      %v1016 = vsel %vm1007, %v1003, %v816
      %v1017 = vsel %vm1007, %v1004, %v818
      %v1018 = vsel %vm1007, %v1005, %v820
      %v1019 = vsel %vm1007, %v1006, %v822
      %vm1020 = vcmask 195584
      %v1021 = vsel %vm1020, %v1008, %v837
      %v1022 = vsel %vm1020, %v1009, %v839
      %v1023 = vsel %vm1020, %v1010, %v841
      %v1024 = vsel %vm1020, %v1011, %v843
      %v1025 = vsel %vm1020, %v1012, %v845
      %v1026 = vsel %vm1020, %v1013, %v847
      %v1027 = vsel %vm1020, %v1014, %v849
      %v1028 = vsel %vm1020, %v1015, %v851
      %v1029 = vsel %vm1020, %v1016, %v853
      %v1030 = vsel %vm1020, %v1017, %v855
      %v1031 = vsel %vm1020, %v1018, %v857
      %v1032 = vsel %vm1020, %v1019, %v859
      %vm1033 = vcmask 228352
      %v1034 = vsel %vm1033, %v1021, %v879
      %v1035 = vsel %vm1033, %v1022, %v881
      %v1036 = vsel %vm1033, %v1023, %v883
      %v1037 = vsel %vm1033, %v1024, %v885
      %v1038 = vsel %vm1033, %v1025, %v887
      %v1039 = vsel %vm1033, %v1026, %v889
      %v1040 = vsel %vm1033, %v1027, %v891
      %v1041 = vsel %vm1033, %v1028, %v893
      %v1042 = vsel %vm1033, %v1029, %v895
      %v1043 = vsel %vm1033, %v1030, %v897
      %v1044 = vsel %vm1033, %v1031, %v899
      %v1045 = vsel %vm1033, %v1032, %v901
      %vm1046 = vcmask 261120
      %v1047 = vsel %vm1046, %v1034, %v920
      %v1048 = vsel %vm1046, %v1035, %v922
      %v1049 = vsel %vm1046, %v1036, %v924
      %v1050 = vsel %vm1046, %v1037, %v926
      %v1051 = vsel %vm1046, %v1038, %v928
      %v1052 = vsel %vm1046, %v1039, %v930
      %v1053 = vsel %vm1046, %v1040, %v932
      %v1054 = vsel %vm1046, %v1041, %v934
      %v1055 = vsel %vm1046, %v1042, %v936
      %v1056 = vsel %vm1046, %v1043, %v938
      %v1057 = vsel %vm1046, %v1044, %v940
      %v1058 = vsel %vm1046, %v1045, %v942
      %v1059 = vpack.c.bf16 %v1048, %v1047
      %v1060 = vpack.c.bf16 %v1050, %v1049
      %v1061 = vpack.c.bf16 %v1052, %v1051
      %v1062 = vpack.c.bf16 %v1054, %v1053
      %v1063 = vpack.c.bf16 %v1056, %v1055
      %v1064 = vpack.c.bf16 %v1058, %v1057
      %v1065 = vld [vmem:[%s3] sm:$0xf]
      %v1066 = vld [vmem:[%s3 + $0x4] sm:$0xf]
      %v1067 = vld [vmem:[%s3 + $0x8] sm:$0xf]
      %v1068 = vld [vmem:[%s3 + $0xc] sm:$0xf]
      %v1069 = vld [vmem:[%s3 + $0x10] sm:$0x3]
      %v1070 = vld [vmem:[%s4] sm:$0x1]
      %v1072 = vlaneseq
      %v1073 = vshrl.u32 %v1072, 7
      %v1074 = vsub.s32 0, %v1073
      %v1075 = vrot.slane %v1070, %v1074
      %v1082 = vunpack.c.l.b16 %v1065
      %v1083 = vunpack.c.l.b16 %v1066
      %v1084 = vunpack.c.l.b16 %v1067
      %v1085 = vunpack.c.l.b16 %v1068
      %v1086 = vunpack.c.l.b16 %v1069
      %v1087 = vpack.c.b16 %v1083, %v1082
      %v1088 = vpack.c.b16 %v1085, %v1084
      %v1089 = vpack.c.b16 %v1086, %v1086
      %vm1092 = vcmask 293888
      %v1094 = vsel %vm1092, %v1059, 0
      %v1097 = vsel %vm1092, %v1060, 0
      %v1100 = vsel %vm1092, %v1061, 0
      %v1103 = vsel %vm1092, %v1062, 0
      %v1106 = vsel %vm1092, %v1063, 0
      %v1109 = vsel %vm1092, %v1064, 0
      %vm1111 = vcmask 1041408
      %v1113 = vsel %vm1111, %v1089, 0
      %1115 = vmatprep.subr.bf16.mxu0 0
      %1116 = vmatpush1.bf16.msra.mxu0 %v1087
      %1117 = vmatprep.subr.bf16.mxu0 0
      %1118 = vmatpush1.bf16.msra.mxu0 %v1088
      %1119 = vmatprep.subr.bf16.mxu0 0
      %1120 = vmatpush1.bf16.msra.mxu0 %v1113
      %1121 = vmatprep.subr.bf16.mxu0 0
      %1122 = vmatpush1.bf16.msra.mxu0 0
      %1123 = vmatprep.subr.bf16.mxu0 0
      %1124 = vmatpush1.bf16.msra.mxu0 0
      %1125 = vmatprep.subr.bf16.mxu0 0
      %1126 = vmatpush1.bf16.msra.mxu0 0
      %1127 = vmatprep.subr.bf16.mxu0 0
      %1128 = vmatpush1.bf16.msra.mxu0 0
      %1129 = vmatprep.subr.bf16.mxu0 0
      %1130 = vmatpush1.bf16.msra.mxu0 0
      %1131 = vmatprep.subr.bf16.mxu0 0
      %1132 = vmatpush1.bf16.msra.mxu0 0
      %1133 = vmatprep.subr.bf16.mxu0 0
      %1134 = vmatpush1.bf16.msra.mxu0 0
      %1135 = vmatprep.subr.bf16.mxu0 0
      %1136 = vmatpush1.bf16.msra.mxu0 0
      %1137 = vmatprep.subr.bf16.mxu0 0
      %1138 = vmatpush1.bf16.msra.mxu0 0
      %1139 = vmatprep.subr.bf16.mxu0 0
      %1140 = vmatpush1.bf16.msra.mxu0 0
      %1141 = vmatprep.subr.bf16.mxu0 0
      %1142 = vmatpush1.bf16.msra.mxu0 0
      %1143 = vmatprep.subr.bf16.mxu0 0
      %1144 = vmatpush1.bf16.msra.mxu0 0
      %1145 = vmatprep.subr.bf16.mxu0 0
      %1146 = vmatpush1.bf16.msra.mxu0 0
      %1147 = vmatprep.mubr.bf16.mxu0 0
      %1148 = vmatmul.mubr.bf16.gmra.mrb[0].mxu0 %v1094
      %v1149 = vpop.f32.mrb[0].mxu0
      %v1150 = vadd.f32 %v1075, %v1149
      %v1151 = vpop.f32.mrb[0].mxu0
      %v1152 = vpop.f32.mrb[0].mxu0
      %v1153 = vadd.f32 %v1075, %v1152
      %v1154 = vpop.f32.mrb[0].mxu0
      %1155 = vmatprep.mubr.bf16.mxu0 0
      %1156 = vmatmul.mubr.bf16.gmra.mrb[0].mxu0 %v1097
      %v1157 = vpop.f32.mrb[0].mxu0
      %v1158 = vadd.f32 %v1075, %v1157
      %v1159 = vpop.f32.mrb[0].mxu0
      %v1160 = vpop.f32.mrb[0].mxu0
      %v1161 = vadd.f32 %v1075, %v1160
      %v1162 = vpop.f32.mrb[0].mxu0
      %1163 = vmatprep.mubr.bf16.mxu0 0
      %1164 = vmatmul.mubr.bf16.gmra.mrb[0].mxu0 %v1100
      %v1165 = vpop.f32.mrb[0].mxu0
      %v1166 = vadd.f32 %v1075, %v1165
      %v1167 = vpop.f32.mrb[0].mxu0
      %v1168 = vpop.f32.mrb[0].mxu0
      %v1169 = vadd.f32 %v1075, %v1168
      %v1170 = vpop.f32.mrb[0].mxu0
      %1171 = vmatprep.mubr.bf16.mxu0 0
      %1172 = vmatmul.mubr.bf16.gmra.mrb[0].mxu0 %v1103
      %v1173 = vpop.f32.mrb[0].mxu0
      %v1174 = vadd.f32 %v1075, %v1173
      %v1175 = vpop.f32.mrb[0].mxu0
      %v1176 = vpop.f32.mrb[0].mxu0
      %v1177 = vadd.f32 %v1075, %v1176
      %v1178 = vpop.f32.mrb[0].mxu0
      %1179 = vmatprep.mubr.bf16.mxu0 0
      %1180 = vmatmul.mubr.bf16.gmra.mrb[0].mxu0 %v1106
      %v1181 = vpop.f32.mrb[0].mxu0
      %v1182 = vadd.f32 %v1075, %v1181
      %v1183 = vpop.f32.mrb[0].mxu0
      %v1184 = vpop.f32.mrb[0].mxu0
      %v1185 = vadd.f32 %v1075, %v1184
      %v1186 = vpop.f32.mrb[0].mxu0
      %1187 = vmatprep.mubr.bf16.mxu0 0
      %1188 = vmatmul.mubr.bf16.gmra.mrb[0].mxu0 %v1109
      %v1189 = vpop.f32.mrb[0].mxu0
      %v1190 = vadd.f32 %v1075, %v1189
      %v1191 = vpop.f32.mrb[0].mxu0
      %v1192 = vpop.f32.mrb[0].mxu0
      %v1193 = vadd.f32 %v1075, %v1192
      %v1194 = vpop.f32.mrb[0].mxu0
      %1195 = vdwg.mxu0
      %v1196 = vmax.f32 %v1150, 0.0
      %v1197 = vmax.f32 %v1153, 0.0
      %v1198 = vmax.f32 %v1158, 0.0
      %v1199 = vmax.f32 %v1161, 0.0
      %v1200 = vmax.f32 %v1166, 0.0
      %v1201 = vmax.f32 %v1169, 0.0
      %v1202 = vmax.f32 %v1174, 0.0
      %v1203 = vmax.f32 %v1177, 0.0
      %v1204 = vmax.f32 %v1182, 0.0
      %v1205 = vmax.f32 %v1185, 0.0
      %v1206 = vmax.f32 %v1190, 0.0
      %v1207 = vmax.f32 %v1193, 0.0
      %v1208 = vmul.f32 %v1196, %v476
      %v1209 = vmul.f32 %v1197, %v476
      %v1210 = vmul.f32 %v1206, %v485
      %v1211 = vmul.f32 %v1207, %v485
      %v1224 = vrot.slane %v1208, 7
      %v1225 = vrot.slane %v1209, 7
      %v1226 = vsel %vm506, %v1224, %v1225
      %v1227 = vrot.slane %v1198, 7
      %v1228 = vrot.slane %v1199, 7
      %v1229 = vsel %vm506, %v1227, %v1228
      %v1230 = vrot.slane %v1200, 7
      %v1231 = vrot.slane %v1201, 7
      %v1232 = vsel %vm506, %v1230, %v1231
      %v1233 = vrot.slane %v1202, 7
      %v1234 = vrot.slane %v1203, 7
      %v1235 = vsel %vm506, %v1233, %v1234
      %v1236 = vrot.slane %v1204, 7
      %v1237 = vrot.slane %v1205, 7
      %v1238 = vsel %vm506, %v1236, %v1237
      %v1239 = vrot.slane %v1210, 7
      %v1240 = vrot.slane %v1211, 7
      %v1241 = vsel %vm506, %v1239, %v1240
      %v1258 = vsel %vm506, 0.0, %v1224
      %v1259 = vsel %vm506, 0.0, %v1227
      %v1260 = vsel %vm506, 0.0, %v1230
      %v1261 = vsel %vm506, 0.0, %v1233
      %v1262 = vsel %vm506, 0.0, %v1236
      %v1263 = vsel %vm506, 0.0, %v1239
      %v1264 = vsel %vm506, %v1225, 0.0
      %v1265 = vsel %vm506, %v1228, 0.0
      %v1266 = vsel %vm506, %v1231, 0.0
      %v1267 = vsel %vm506, %v1234, 0.0
      %v1268 = vsel %vm506, %v1237, 0.0
      %v1269 = vsel %vm506, %v1240, 0.0
      %v1278 = vrot.slane %v1258, 1
      %v1279 = vrot.slane %v1226, 1
      %v1280 = vsel %vm581, %v1278, %v1279
      %v1281 = vrot.slane %v1264, 1
      %v1282 = vsel %vm581, %v1279, %v1281
      %v1283 = vrot.slane %v1259, 1
      %v1284 = vrot.slane %v1229, 1
      %v1285 = vsel %vm581, %v1283, %v1284
      %v1286 = vrot.slane %v1265, 1
      %v1287 = vsel %vm581, %v1284, %v1286
      %v1288 = vrot.slane %v1260, 1
      %v1289 = vrot.slane %v1232, 1
      %v1290 = vsel %vm581, %v1288, %v1289
      %v1291 = vrot.slane %v1266, 1
      %v1292 = vsel %vm581, %v1289, %v1291
      %v1293 = vrot.slane %v1261, 1
      %v1294 = vrot.slane %v1235, 1
      %v1295 = vsel %vm581, %v1293, %v1294
      %v1296 = vrot.slane %v1267, 1
      %v1297 = vsel %vm581, %v1294, %v1296
      %1298 = vrot.lane.b32.xlu0 %v1280, 4
      %v1299 = vpop.permute.xlu0 %1298
      %1300 = vrot.lane.b32.xlu0 %v1282, 4
      %v1301 = vpop.permute.xlu0 %1300
      %1302 = vrot.lane.b32.xlu0 %v1285, 4
      %v1303 = vpop.permute.xlu0 %1302
      %1304 = vrot.lane.b32.xlu0 %v1287, 4
      %v1305 = vpop.permute.xlu0 %1304
      %1306 = vrot.lane.b32.xlu0 %v1290, 4
      %v1307 = vpop.permute.xlu0 %1306
      %1308 = vrot.lane.b32.xlu0 %v1292, 4
      %v1309 = vpop.permute.xlu0 %1308
      %1310 = vrot.lane.b32.xlu0 %v1295, 4
      %v1311 = vpop.permute.xlu0 %1310
      %1312 = vrot.lane.b32.xlu0 %v1297, 4
      %v1313 = vpop.permute.xlu0 %1312
      %v1322 = vrot.slane %v1258, 2
      %v1323 = vrot.slane %v1226, 2
      %v1324 = vsel %vm648, %v1322, %v1323
      %v1325 = vrot.slane %v1264, 2
      %v1326 = vsel %vm648, %v1323, %v1325
      %v1327 = vrot.slane %v1259, 2
      %v1328 = vrot.slane %v1229, 2
      %v1329 = vsel %vm648, %v1327, %v1328
      %v1330 = vrot.slane %v1265, 2
      %v1331 = vsel %vm648, %v1328, %v1330
      %v1332 = vrot.slane %v1260, 2
      %v1333 = vrot.slane %v1232, 2
      %v1334 = vsel %vm648, %v1332, %v1333
      %v1335 = vrot.slane %v1266, 2
      %v1336 = vsel %vm648, %v1333, %v1335
      %v1337 = vrot.slane %v1261, 2
      %v1338 = vrot.slane %v1235, 2
      %v1339 = vsel %vm648, %v1337, %v1338
      %v1340 = vrot.slane %v1267, 2
      %v1341 = vsel %vm648, %v1338, %v1340
      %1342 = vrot.lane.b32.xlu0 %v1324, 8
      %v1343 = vpop.permute.xlu0 %1342
      %1344 = vrot.lane.b32.xlu0 %v1326, 8
      %v1345 = vpop.permute.xlu0 %1344
      %1346 = vrot.lane.b32.xlu0 %v1329, 8
      %v1347 = vpop.permute.xlu0 %1346
      %1348 = vrot.lane.b32.xlu0 %v1331, 8
      %v1349 = vpop.permute.xlu0 %1348
      %1350 = vrot.lane.b32.xlu0 %v1334, 8
      %v1351 = vpop.permute.xlu0 %1350
      %1352 = vrot.lane.b32.xlu0 %v1336, 8
      %v1353 = vpop.permute.xlu0 %1352
      %1354 = vrot.lane.b32.xlu0 %v1339, 8
      %v1355 = vpop.permute.xlu0 %1354
      %1356 = vrot.lane.b32.xlu0 %v1341, 8
      %v1357 = vpop.permute.xlu0 %1356
      %1367 = vrot.lane.b32.xlu0 %v1259, 12
      %v1368 = vpop.permute.xlu0 %1367
      %1369 = vrot.lane.b32.xlu0 %v1229, 12
      %v1370 = vpop.permute.xlu0 %1369
      %1371 = vrot.lane.b32.xlu0 %v1260, 12
      %v1372 = vpop.permute.xlu0 %1371
      %1373 = vrot.lane.b32.xlu0 %v1232, 12
      %v1374 = vpop.permute.xlu0 %1373
      %1375 = vrot.lane.b32.xlu0 %v1261, 12
      %v1376 = vpop.permute.xlu0 %1375
      %1377 = vrot.lane.b32.xlu0 %v1235, 12
      %v1378 = vpop.permute.xlu0 %1377
      %1379 = vrot.lane.b32.xlu0 %v1262, 12
      %v1380 = vpop.permute.xlu0 %1379
      %1381 = vrot.lane.b32.xlu0 %v1238, 12
      %v1382 = vpop.permute.xlu0 %1381
      %v1392 = vrot.slane %v1262, 1
      %v1393 = vrot.slane %v1238, 1
      %v1394 = vsel %vm581, %v1392, %v1393
      %v1395 = vrot.slane %v1268, 1
      %v1396 = vsel %vm581, %v1393, %v1395
      %1397 = vrot.lane.b32.xlu0 %v1285, 16
      %v1398 = vpop.permute.xlu0 %1397
      %1399 = vrot.lane.b32.xlu0 %v1287, 16
      %v1400 = vpop.permute.xlu0 %1399
      %1401 = vrot.lane.b32.xlu0 %v1290, 16
      %v1402 = vpop.permute.xlu0 %1401
      %1403 = vrot.lane.b32.xlu0 %v1292, 16
      %v1404 = vpop.permute.xlu0 %1403
      %1405 = vrot.lane.b32.xlu0 %v1295, 16
      %v1406 = vpop.permute.xlu0 %1405
      %1407 = vrot.lane.b32.xlu0 %v1297, 16
      %v1408 = vpop.permute.xlu0 %1407
      %1409 = vrot.lane.b32.xlu0 %v1394, 16
      %v1410 = vpop.permute.xlu0 %1409
      %1411 = vrot.lane.b32.xlu0 %v1396, 16
      %v1412 = vpop.permute.xlu0 %1411
      %v1421 = vrot.slane %v1262, 2
      %v1422 = vrot.slane %v1238, 2
      %v1423 = vsel %vm648, %v1421, %v1422
      %v1424 = vrot.slane %v1268, 2
      %v1425 = vsel %vm648, %v1422, %v1424
      %1426 = vrot.lane.b32.xlu0 %v1329, 20
      %v1427 = vpop.permute.xlu0 %1426
      %1428 = vrot.lane.b32.xlu0 %v1331, 20
      %v1429 = vpop.permute.xlu0 %1428
      %1430 = vrot.lane.b32.xlu0 %v1334, 20
      %v1431 = vpop.permute.xlu0 %1430
      %1432 = vrot.lane.b32.xlu0 %v1336, 20
      %v1433 = vpop.permute.xlu0 %1432
      %1434 = vrot.lane.b32.xlu0 %v1339, 20
      %v1435 = vpop.permute.xlu0 %1434
      %1436 = vrot.lane.b32.xlu0 %v1341, 20
      %v1437 = vpop.permute.xlu0 %1436
      %1438 = vrot.lane.b32.xlu0 %v1423, 20
      %v1439 = vpop.permute.xlu0 %1438
      %1440 = vrot.lane.b32.xlu0 %v1425, 20
      %v1441 = vpop.permute.xlu0 %1440
      %1451 = vrot.lane.b32.xlu0 %v1260, 24
      %v1452 = vpop.permute.xlu0 %1451
      %1453 = vrot.lane.b32.xlu0 %v1232, 24
      %v1454 = vpop.permute.xlu0 %1453
      %1455 = vrot.lane.b32.xlu0 %v1261, 24
      %v1456 = vpop.permute.xlu0 %1455
      %1457 = vrot.lane.b32.xlu0 %v1235, 24
      %v1458 = vpop.permute.xlu0 %1457
      %1459 = vrot.lane.b32.xlu0 %v1262, 24
      %v1460 = vpop.permute.xlu0 %1459
      %1461 = vrot.lane.b32.xlu0 %v1238, 24
      %v1462 = vpop.permute.xlu0 %1461
      %1463 = vrot.lane.b32.xlu0 %v1263, 24
      %v1464 = vpop.permute.xlu0 %1463
      %1465 = vrot.lane.b32.xlu0 %v1241, 24
      %v1466 = vpop.permute.xlu0 %1465
      %v1476 = vrot.slane %v1263, 1
      %v1477 = vrot.slane %v1241, 1
      %v1478 = vsel %vm581, %v1476, %v1477
      %v1479 = vrot.slane %v1269, 1
      %v1480 = vsel %vm581, %v1477, %v1479
      %1481 = vrot.lane.b32.xlu0 %v1290, 28
      %v1482 = vpop.permute.xlu0 %1481
      %1483 = vrot.lane.b32.xlu0 %v1292, 28
      %v1484 = vpop.permute.xlu0 %1483
      %1485 = vrot.lane.b32.xlu0 %v1295, 28
      %v1486 = vpop.permute.xlu0 %1485
      %1487 = vrot.lane.b32.xlu0 %v1297, 28
      %v1488 = vpop.permute.xlu0 %1487
      %1489 = vrot.lane.b32.xlu0 %v1394, 28
      %v1490 = vpop.permute.xlu0 %1489
      %1491 = vrot.lane.b32.xlu0 %v1396, 28
      %v1492 = vpop.permute.xlu0 %1491
      %1493 = vrot.lane.b32.xlu0 %v1478, 28
      %v1494 = vpop.permute.xlu0 %1493
      %1495 = vrot.lane.b32.xlu0 %v1480, 28
      %v1496 = vpop.permute.xlu0 %1495
      %v1505 = vrot.slane %v1263, 2
      %v1506 = vrot.slane %v1241, 2
      %v1507 = vsel %vm648, %v1505, %v1506
      %v1508 = vrot.slane %v1269, 2
      %v1509 = vsel %vm648, %v1506, %v1508
      %1510 = vrot.lane.b32.xlu0 %v1334, 32
      %v1511 = vpop.permute.xlu0 %1510
      %1512 = vrot.lane.b32.xlu0 %v1336, 32
      %v1513 = vpop.permute.xlu0 %1512
      %1514 = vrot.lane.b32.xlu0 %v1339, 32
      %v1515 = vpop.permute.xlu0 %1514
      %1516 = vrot.lane.b32.xlu0 %v1341, 32
      %v1517 = vpop.permute.xlu0 %1516
      %1518 = vrot.lane.b32.xlu0 %v1423, 32
      %v1519 = vpop.permute.xlu0 %1518
      %1520 = vrot.lane.b32.xlu0 %v1425, 32
      %v1521 = vpop.permute.xlu0 %1520
      %1522 = vrot.lane.b32.xlu0 %v1507, 32
      %v1523 = vpop.permute.xlu0 %1522
      %1524 = vrot.lane.b32.xlu0 %v1509, 32
      %v1525 = vpop.permute.xlu0 %1524
      %v1534 = vsel %vm955, %v1258, %v1299
      %v1535 = vsel %vm955, %v1226, %v1301
      %v1536 = vsel %vm955, %v1259, %v1303
      %v1537 = vsel %vm955, %v1229, %v1305
      %v1538 = vsel %vm955, %v1260, %v1307
      %v1539 = vsel %vm955, %v1232, %v1309
      %v1540 = vsel %vm955, %v1261, %v1311
      %v1541 = vsel %vm955, %v1235, %v1313
      %v1542 = vsel %vm968, %v1534, %v1343
      %v1543 = vsel %vm968, %v1535, %v1345
      %v1544 = vsel %vm968, %v1536, %v1347
      %v1545 = vsel %vm968, %v1537, %v1349
      %v1546 = vsel %vm968, %v1538, %v1351
      %v1547 = vsel %vm968, %v1539, %v1353
      %v1548 = vsel %vm968, %v1540, %v1355
      %v1549 = vsel %vm968, %v1541, %v1357
      %v1550 = vsel %vm981, %v1542, %v1368
      %v1551 = vsel %vm981, %v1543, %v1370
      %v1552 = vsel %vm981, %v1544, %v1372
      %v1553 = vsel %vm981, %v1545, %v1374
      %v1554 = vsel %vm981, %v1546, %v1376
      %v1555 = vsel %vm981, %v1547, %v1378
      %v1556 = vsel %vm981, %v1548, %v1380
      %v1557 = vsel %vm981, %v1549, %v1382
      %v1558 = vsel %vm994, %v1550, %v1398
      %v1559 = vsel %vm994, %v1551, %v1400
      %v1560 = vsel %vm994, %v1552, %v1402
      %v1561 = vsel %vm994, %v1553, %v1404
      %v1562 = vsel %vm994, %v1554, %v1406
      %v1563 = vsel %vm994, %v1555, %v1408
      %v1564 = vsel %vm994, %v1556, %v1410
      %v1565 = vsel %vm994, %v1557, %v1412
      %v1566 = vsel %vm1007, %v1558, %v1427
      %v1567 = vsel %vm1007, %v1559, %v1429
      %v1568 = vsel %vm1007, %v1560, %v1431
      %v1569 = vsel %vm1007, %v1561, %v1433
      %v1570 = vsel %vm1007, %v1562, %v1435
      %v1571 = vsel %vm1007, %v1563, %v1437
      %v1572 = vsel %vm1007, %v1564, %v1439
      %v1573 = vsel %vm1007, %v1565, %v1441
      %v1574 = vsel %vm1020, %v1566, %v1452
      %v1575 = vsel %vm1020, %v1567, %v1454
      %v1576 = vsel %vm1020, %v1568, %v1456
      %v1577 = vsel %vm1020, %v1569, %v1458
      %v1578 = vsel %vm1020, %v1570, %v1460
      %v1579 = vsel %vm1020, %v1571, %v1462
      %v1580 = vsel %vm1020, %v1572, %v1464
      %v1581 = vsel %vm1020, %v1573, %v1466
      %v1582 = vsel %vm1033, %v1574, %v1482
      %v1583 = vsel %vm1033, %v1575, %v1484
      %v1584 = vsel %vm1033, %v1576, %v1486
      %v1585 = vsel %vm1033, %v1577, %v1488
      %v1586 = vsel %vm1033, %v1578, %v1490
      %v1587 = vsel %vm1033, %v1579, %v1492
      %v1588 = vsel %vm1033, %v1580, %v1494
      %v1589 = vsel %vm1033, %v1581, %v1496
      %v1590 = vsel %vm1046, %v1582, %v1511
      %v1591 = vsel %vm1046, %v1583, %v1513
      %v1592 = vsel %vm1046, %v1584, %v1515
      %v1593 = vsel %vm1046, %v1585, %v1517
      %v1594 = vsel %vm1046, %v1586, %v1519
      %v1595 = vsel %vm1046, %v1587, %v1521
      %v1596 = vsel %vm1046, %v1588, %v1523
      %v1597 = vsel %vm1046, %v1589, %v1525
      %v1598 = vpack.c.bf16 %v1591, %v1590
      %v1599 = vpack.c.bf16 %v1593, %v1592
      %v1600 = vpack.c.bf16 %v1595, %v1594
      %v1601 = vpack.c.bf16 %v1597, %v1596
      %v1602 = vld [vmem:[%s5] sm:$0xf]
      %v1603 = vld [vmem:[%s5 + $0x4] sm:$0xf]
      %v1604 = vld [vmem:[%s5 + $0x8] sm:$0xf]
      %v1605 = vld [vmem:[%s5 + $0xc] sm:$0xf]
      %v1606 = vld [vmem:[%s5 + $0x10] sm:$0x3]
      %v1607 = vld [vmem:[%s6] sm:$0x1]
      %v1609 = vlaneseq
      %v1610 = vshrl.u32 %v1609, 7
      %v1611 = vsub.s32 0, %v1610
      %v1612 = vrot.slane %v1607, %v1611
      %v1619 = vunpack.c.l.b16 %v1602
      %v1620 = vunpack.c.l.b16 %v1603
      %v1621 = vunpack.c.l.b16 %v1604
      %v1622 = vunpack.c.l.b16 %v1605
      %v1623 = vunpack.c.l.b16 %v1606
      %v1624 = vpack.c.b16 %v1620, %v1619
      %v1625 = vpack.c.b16 %v1622, %v1621
      %v1626 = vpack.c.b16 %v1623, %v1623
      %v1630 = vsel %vm1092, %v1598, 0
      %v1633 = vsel %vm1092, %v1599, 0
      %v1636 = vsel %vm1092, %v1600, 0
      %v1639 = vsel %vm1092, %v1601, 0
      %v1642 = vsel %vm1111, %v1626, 0
      %1644 = vmatprep.subr.bf16.mxu0 0
      %1645 = vmatpush1.bf16.msra.mxu0 %v1624
      %1646 = vmatprep.subr.bf16.mxu0 0
      %1647 = vmatpush1.bf16.msra.mxu0 %v1625
      %1648 = vmatprep.subr.bf16.mxu0 0
      %1649 = vmatpush1.bf16.msra.mxu0 %v1642
      %1650 = vmatprep.subr.bf16.mxu0 0
      %1651 = vmatpush1.bf16.msra.mxu0 0
      %1652 = vmatprep.subr.bf16.mxu0 0
      %1653 = vmatpush1.bf16.msra.mxu0 0
      %1654 = vmatprep.subr.bf16.mxu0 0
      %1655 = vmatpush1.bf16.msra.mxu0 0
      %1656 = vmatprep.subr.bf16.mxu0 0
      %1657 = vmatpush1.bf16.msra.mxu0 0
      %1658 = vmatprep.subr.bf16.mxu0 0
      %1659 = vmatpush1.bf16.msra.mxu0 0
      %1660 = vmatprep.subr.bf16.mxu0 0
      %1661 = vmatpush1.bf16.msra.mxu0 0
      %1662 = vmatprep.subr.bf16.mxu0 0
      %1663 = vmatpush1.bf16.msra.mxu0 0
      %1664 = vmatprep.subr.bf16.mxu0 0
      %1665 = vmatpush1.bf16.msra.mxu0 0
      %1666 = vmatprep.subr.bf16.mxu0 0
      %1667 = vmatpush1.bf16.msra.mxu0 0
      %1668 = vmatprep.subr.bf16.mxu0 0
      %1669 = vmatpush1.bf16.msra.mxu0 0
      %1670 = vmatprep.subr.bf16.mxu0 0
      %1671 = vmatpush1.bf16.msra.mxu0 0
      %1672 = vmatprep.subr.bf16.mxu0 0
      %1673 = vmatpush1.bf16.msra.mxu0 0
      %1674 = vmatprep.subr.bf16.mxu0 0
      %1675 = vmatpush1.bf16.msra.mxu0 0
      %1676 = vmatprep.mubr.bf16.mxu0 0
      %1677 = vmatmul.mubr.bf16.gmra.mrb[0].mxu0 %v1630
      %v1678 = vpop.f32.mrb[0].mxu0
      %v1679 = vadd.f32 %v1612, %v1678
      %v1680 = vpop.f32.mrb[0].mxu0
      %v1681 = vpop.f32.mrb[0].mxu0
      %v1682 = vadd.f32 %v1612, %v1681
      %v1683 = vpop.f32.mrb[0].mxu0
      %1684 = vmatprep.mubr.bf16.mxu0 0
      %1685 = vmatmul.mubr.bf16.gmra.mrb[0].mxu0 %v1633
      %v1686 = vpop.f32.mrb[0].mxu0
      %v1687 = vadd.f32 %v1612, %v1686
      %v1688 = vpop.f32.mrb[0].mxu0
      %v1689 = vpop.f32.mrb[0].mxu0
      %v1690 = vadd.f32 %v1612, %v1689
      %v1691 = vpop.f32.mrb[0].mxu0
      %1692 = vmatprep.mubr.bf16.mxu0 0
      %1693 = vmatmul.mubr.bf16.gmra.mrb[0].mxu0 %v1636
      %v1694 = vpop.f32.mrb[0].mxu0
      %v1695 = vadd.f32 %v1612, %v1694
      %v1696 = vpop.f32.mrb[0].mxu0
      %v1697 = vpop.f32.mrb[0].mxu0
      %v1698 = vadd.f32 %v1612, %v1697
      %v1699 = vpop.f32.mrb[0].mxu0
      %1700 = vmatprep.mubr.bf16.mxu0 0
      %1701 = vmatmul.mubr.bf16.gmra.mrb[0].mxu0 %v1639
      %v1702 = vpop.f32.mrb[0].mxu0
      %v1703 = vadd.f32 %v1612, %v1702
      %v1704 = vpop.f32.mrb[0].mxu0
      %v1705 = vpop.f32.mrb[0].mxu0
      %v1706 = vadd.f32 %v1612, %v1705
      %v1707 = vpop.f32.mrb[0].mxu0
      %1708 = vdwg.mxu0
      %v1709 = vadd.f32 %v1679, %v464
      %v1710 = vadd.f32 %v1682, %v465
      %v1711 = vadd.f32 %v1687, %v466
      %v1712 = vadd.f32 %v1690, %v467
      %v1713 = vadd.f32 %v1695, %v468
      %v1714 = vadd.f32 %v1698, %v469
      %v1715 = vadd.f32 %v1703, %v470
      %v1716 = vadd.f32 %v1706, %v471
      %v1717 = vmax.f32 %v1709, 0.0
      %v1718 = vmax.f32 %v1710, 0.0
      %v1719 = vmax.f32 %v1711, 0.0
      %v1720 = vmax.f32 %v1712, 0.0
      %v1721 = vmax.f32 %v1713, 0.0
      %v1722 = vmax.f32 %v1714, 0.0
      %v1723 = vmax.f32 %v1715, 0.0
      %v1724 = vmax.f32 %v1716, 0.0
      %1725 = vst.msk [vmem:[%s455] sm:$0xff] %vm955, %v1717
      %1726 = vst.msk [vmem:[%s455 + $0x8] sm:$0xff] %vm955, %v1718
      %1727 = vst.msk [vmem:[%s455 + $0x10] sm:$0xff] %vm955, %v1719
      %1728 = vst.msk [vmem:[%s455 + $0x18] sm:$0xff] %vm955, %v1720
      %1729 = vst.msk [vmem:[%s455 + $0x20] sm:$0xff] %vm955, %v1721
      %1730 = vst.msk [vmem:[%s455 + $0x28] sm:$0xff] %vm955, %v1722
      %1731 = vst.msk [vmem:[%s455 + $0x30] sm:$0xff] %vm955, %v1723
      %1732 = vst.msk [vmem:[%s455 + $0x38] sm:$0xff] %vm955, %v1724
      %s1733 = smul.u32 4, %s23
      %p1734 = scmp.lt.s32.totalorder %s22, 1
      %s1735 = scalar_select %p1734, %s22, 1
      %p1736 = scmp.lt.s32.totalorder %s1733, 15
      %s1737 = scalar_select %p1736, %s1733, 15
      %s1738 = smul.addr %s1737, 2
      %s1739 = smul.addr %s1735, 32
      %s1740 = sadd.s32 %s1738, %s1739
      %s1741 = smul.addr %s1740, 8
      %s1742 = scalar_lea.vmem %s7, %s1741
      // Predicated region
      $region49: #{basic_block_forward.1} parent=47 // pred_check
        %p1743 = pneg %p234
      $region50: #{basic_block_forward.1} parent=47 // pred_check_branch
        %1745 = sbr.rel (%p1743) target = $region52
      $region51: #{basic_block_forward.1} parent=47 // pred_region
        %s1746 = smul.u32 4, %s23
      $region52: #{basic_block_forward.1} parent=47 // pred_fallthru
        _
    $region48: #{basic_block_forward.1} parent=5 // pred_fallthru
      _
    %p1747 = scmp.le.s32.totalorder 2, %s13
    // Predicated region
    $region53: #{basic_block_forward.1} parent=5 // pred_check
      %p1748 = pneg %p1747
    $region54: #{basic_block_forward.1} parent=5 // pred_check_branch
      %1750 = sbr.rel (%p1748) target = $region56
    $region55: #{basic_block_forward.1} parent=5 // pred_region
      %s1751 = ssub.s32 %s13, 2
      // Predicated region
      $region57: #{basic_block_forward.1} parent=55 // pred_check
        %p1752 = pneg %p240
      $region58: #{basic_block_forward.1} parent=55 // pred_check_branch
        %1754 = sbr.rel (%p1752) target = $region60
      $region59: #{basic_block_forward.1} parent=55 // pred_region
        %s1755 = smul.u32 4, %s25
        %p1756 = scmp.lt.s32.totalorder %s24, 1
        %s1757 = scalar_select %p1756, %s24, 1
        %p1758 = scmp.lt.s32.totalorder %s1755, 15
        %s1759 = scalar_select %p1758, %s1755, 15
        %s1760 = smul.addr %s1759, 2
        %s1761 = smul.addr %s1757, 32
        %s1762 = sadd.s32 %s1760, %s1761
        %s1763 = smul.addr %s1762, 8
        %s1764 = scalar_lea.vmem %s7, %s1763
      $region60: #{basic_block_forward.1} parent=55 // pred_fallthru
        _
    $region56: #{basic_block_forward.1} parent=5 // pred_fallthru
      _
  $region6: #{basic_block_forward.1} parent=0 // loop_footer
    %s17 = sadd.s32 1, %s13
  $region7: #{basic_block_forward.1} parent=0 // loop_footer_branch
    %12 = sbr.rel target = $region3
  $region8: #{basic_block_forward.1} parent=0 // loop_exit
    _

</llo_original>
